<compile_context>
chip_gen: v7x
topology: tpu7x:2x2x1
jax: 0.10.0
libtpu: 0.0.40
codegen_flags: <defaults>
</compile_context>

<pallas_src>
from functools import partial

import numpy as np
import jax
import jax.numpy as jnp
from jax import lax
from jax.experimental import pallas as pl
from jax.experimental.pallas import tpu as pltpu


def _round_up(x, m):
    return ((x + m - 1) // m) * m


def _vmem_capacity_bytes():
    try:
        return int(pltpu.get_tpu_info().vmem_capacity_bytes)
    except Exception:
        return 64 * 1024 * 1024          # conservative fallback (v7x per-TC VMEM)


def _num_tensorcores():
    try:
        return 2 if "v7" in jax.devices()[0].device_kind.lower() else 1
    except Exception:
        return 1


def _pick_tb(Bp, E, H, Sp, vmem_cap):
    """VMEM-budget-aware batch-tile size: multiple of 8 that divides Bp."""
    budget = int(vmem_cap * 0.5)         # headroom: weights, outputs, compiler scratch
    # per batch-row bytes: double-buffered bf16 enc tile + f32 proj / tanh / softmax temps
    per_row = Sp * (2 * 2 * E            # enc tile (bf16, 2 pipeline buffers)
                    + 4 * 2 * H          # proj (f32, 2H wide)
                    + 4 * 2 * H          # t_att / t_ptr (f32)
                    + 6 * 4)             # scores / exp / attn / probs rows
    tb = max(8, min(Bp, (budget // max(per_row, 1)) // 8 * 8))
    while Bp % tb:
        tb -= 8
    nc = _num_tensorcores()
    if nc > 1 and Bp // tb < nc and Bp >= 8 * nc:   # feed both TCs only on v7x
        tb = max(8, (Bp // nc) // 8 * 8)
        while Bp % tb:
            tb -= 8
    return tb


def pointer_kernel(enc_ref, xh_ref, wg_ref, bg_ref, wenc_ref, wad_ref, wpc_ref,
                   va_ref, vp_ref, probs_ref, hh_ref, *, hidden, seq_len):
    f32 = jnp.float32
    H = hidden
    S = seq_len
    TB, Sp, E = enc_ref.shape

    # ---- GRU step: ONE fused (TB,2H)@(2H,4H) GEMM, gate math in f32 ----
    xh = xh_ref[...]                                   # (TB, 2H) = [x | h_prev]
    h = xh[:, H:2 * H]
    g = jnp.dot(xh, wg_ref[...], preferred_element_type=f32) + bg_ref[...]   # (TB, 4H)
    r = jax.nn.sigmoid(g[:, 0:H])
    z = jax.nn.sigmoid(g[:, H:2 * H])
    n = jnp.tanh(g[:, 2 * H:3 * H] + r * g[:, 3 * H:4 * H])
    h_new = (1.0 - z) * n + z * h                      # (TB, H)
    hh_ref[...] = h_new
    # TODO(synk): nn.Dropout(drop_rnn / drop_hh) are identity in eval mode; not modeled.

    # ---- encoder projection: ONE 2-D GEMM (bf16 in, f32 accumulate) ----
    enc3 = enc_ref[...]                                # (TB, Sp, E)  bf16
    enc2 = enc3.reshape(TB * Sp, E)                    # leading-dim merge (Sp % 8 == 0)
    proj = jnp.dot(enc2, wenc_ref[...],
                   preferred_element_type=f32).reshape(TB, Sp, 2 * H)
    proj_att = proj[:, :, 0:H]                         # (TB, Sp, H)
    proj_ptr = proj[:, :, H:2 * H]                     # (TB, Sp, H)

    # ---- additive attention scores + masked softmax over seq positions ----
    dec_term = jnp.dot(h_new, wad_ref[...], preferred_element_type=f32)      # (TB, H)
    t_att = jnp.tanh(proj_att + dec_term[:, None, :])                        # (TB, Sp, H)
    scores = jnp.sum(t_att * va_ref[...][None, :, :], axis=-1)               # (TB, Sp)
    if Sp > S:                                         # mask seq padding (static)
        pos = lax.broadcasted_iota(jnp.int32, scores.shape, 1)
        scores = jnp.where(pos < S, scores, -1e30)
    m = jnp.max(scores, axis=-1, keepdims=True)
    ex = jnp.exp(scores - m)
    denom = jnp.sum(ex, axis=-1, keepdims=True)
    attn = ex * pl.reciprocal(denom, approx=True)                            # (TB, Sp)

    # ---- context: VPU multiply + cross-sublane reduce on the resident enc tile ----
    ctx = jnp.sum(attn[:, :, None] * enc3.astype(f32), axis=1)               # (TB, E)
    ctx_term = jnp.dot(ctx, wpc_ref[...], preferred_element_type=f32)        # (TB, H)

    # ---- pointer energies (raw logits, like the PyTorch module) ----
    t_ptr = jnp.tanh(proj_ptr + ctx_term[:, None, :])                        # (TB, Sp, H)
    probs_ref[...] = jnp.sum(t_ptr * vp_ref[...][None, :, :], axis=-1)       # (TB, Sp)


def pointer_forward(encoder_hidden, decoder_hidden, last_hh, params, tb=None):
    """encoder_hidden (B,E,S), decoder_hidden (B,H,1), last_hh (1,B,H)."""
    f32, bf16 = jnp.float32, jnp.bfloat16
    B, E, S = encoder_hidden.shape
    H = decoder_hidden.shape[1]

    # --- fused GRU weight: [x | h] (B,2H) @ (2H,4H) -> columns [r | z | n_i | n_h] ---
    zhh = jnp.zeros((H, H), f32)
    w_gru = jnp.concatenate([
        jnp.concatenate([params["w_ir"], params["w_iz"], params["w_in"], zhh], axis=1),
        jnp.concatenate([params["w_hr"], params["w_hz"], zhh, params["w_hn"]], axis=1),
    ], axis=0)                                                               # (2H, 4H)
    b_gru = jnp.concatenate([params["b_ir"] + params["b_hr"],
                             params["b_iz"] + params["b_hz"],
                             params["b_in"], params["b_hn"]], axis=1)        # (1, 4H)

    # --- encoder-side weights: stack only [W_att_e; W_ptr_e]; W_ptr_c stays unfolded ---
    w_enc_t = jnp.concatenate([params["w_att_e"], params["w_ptr_e"]],
                              axis=0).T.astype(bf16)                         # (E, 2H)
    w_att_d_t = params["w_att_d"].T.astype(f32)                              # (H, H)
    w_ptr_c_t = params["w_ptr_c"].T.astype(f32)                              # (E, H)
    v_att = params["v_att"].astype(f32)                                      # (1, H)
    v_ptr = params["v_ptr"].astype(f32)                                      # (1, H)

    # --- tiling: batch tiles (VMEM-aware), seq padded only to a sublane multiple ---
    Sp = _round_up(S, 8)
    Bp = _round_up(B, 8)
    vmem_cap = _vmem_capacity_bytes()
    if tb is None:
        tb = _pick_tb(Bp, E, H, Sp, vmem_cap)
    nb = Bp // tb

    # small per-step inputs: [x | h_prev] concatenated once in the wrapper
    x = decoder_hidden[:, :, 0].astype(f32)                                  # (B, H)
    h0 = last_hh[0].astype(f32)                                              # (B, H)
    xh = jnp.pad(jnp.concatenate([x, h0], axis=1), ((0, Bp - B), (0, 0)))    # (Bp, 2H)

    # single relayout of enc: (B,E,S) -> (Bp,Sp,E) bf16 (good GEMM layout, half VMEM)
    enc_bse = jnp.pad(jnp.transpose(encoder_hidden, (0, 2, 1)).astype(bf16),
                      ((0, Bp - B), (0, Sp - S), (0, 0)))

    in_specs = [
        pl.BlockSpec((tb, Sp, E), lambda b: (b, 0, 0)),     # enc tile (full S, full E)
        pl.BlockSpec((tb, 2 * H), lambda b: (b, 0)),        # [x | h] tile
        pl.BlockSpec(w_gru.shape, lambda b: (0, 0)),        # constant-index weights
        pl.BlockSpec(b_gru.shape, lambda b: (0, 0)),
        pl.BlockSpec(w_enc_t.shape, lambda b: (0, 0)),
        pl.BlockSpec(w_att_d_t.shape, lambda b: (0, 0)),
        pl.BlockSpec(w_ptr_c_t.shape, lambda b: (0, 0)),
        pl.BlockSpec(v_att.shape, lambda b: (0, 0)),
        pl.BlockSpec(v_ptr.shape, lambda b: (0, 0)),
    ]
    out_specs = [
        pl.BlockSpec((tb, Sp), lambda b: (b, 0)),           # pointer logits
        pl.BlockSpec((tb, H), lambda b: (b, 0)),            # new hidden state
    ]
    out_shape = (jax.ShapeDtypeStruct((Bp, Sp), f32),
                 jax.ShapeDtypeStruct((Bp, H), f32))

    kern = partial(pointer_kernel, hidden=H, seq_len=S)
    probs_p, hh_p = pl.pallas_call(
        kern,
        out_shape=out_shape,
        grid_spec=pltpu.PrefetchScalarGridSpec(
            num_scalar_prefetch=0,
            grid=(nb,),
            in_specs=in_specs,
            out_specs=out_specs),
        compiler_params=pltpu.CompilerParams(
            dimension_semantics=("parallel",),
            vmem_limit_bytes=int(vmem_cap * 0.85)),
    )(enc_bse, xh, w_gru, b_gru, w_enc_t, w_att_d_t, w_ptr_c_t, v_att, v_ptr)

    return probs_p[:B, :S], hh_p[:B][None, :, :]             # (B,S), (1,B,H)


def pointer_reference(encoder_hidden, decoder_hidden, last_hh, p):
    """Pure-JAX reference mirroring the PyTorch forward."""
    x = decoder_hidden[:, :, 0]      # (B, H)
    h = last_hh[0]                   # (B, H)
    r = jax.nn.sigmoid(x @ p["w_ir"] + p["b_ir"] + h @ p["w_hr"] + p["b_hr"])
    z = jax.nn.sigmoid(x @ p["w_iz"] + p["b_iz"] + h @ p["w_hz"] + p["b_hz"])
    n = jnp.tanh(x @ p["w_in"] + p["b_in"] + r * (h @ p["w_hn"] + p["b_hn"]))
    h_new = (1.0 - z) * n + z * h    # (B, H)

    enc = encoder_hidden             # (B, E, S)
    t = jnp.tanh(jnp.einsum("he,bes->bhs", p["w_att_e"], enc)
                 + jnp.einsum("hd,bd->bh", p["w_att_d"], h_new)[:, :, None])
    scores = jnp.einsum("oh,bhs->bos", p["v_att"], t)          # (B, 1, S)
    attn = jax.nn.softmax(scores, axis=-1)
    ctx = jnp.einsum("bos,bes->be", attn, enc)                 # (B, E)
    t2 = jnp.tanh(jnp.einsum("he,bes->bhs", p["w_ptr_e"], enc)
                  + jnp.einsum("he,be->bh", p["w_ptr_c"], ctx)[:, :, None])
    probs = jnp.einsum("oh,bhs->bos", p["v_ptr"], t2)[:, 0, :]  # (B, S)
    return probs, h_new[None, :, :]


def make_params(key, E, H):
    """Deterministic synthetic weights (shapes from Pointer.__init__).

    The PyTorch module zero-inits v / W (trivial output); here small random
    values exercise nontrivial compute.  GRU weights use PyTorch's
    uniform(-1/sqrt(H), 1/sqrt(H)) init, stored pre-transposed so activations
    multiply as (B,H) @ (H,H).
    """
    ks = jax.random.split(key, 20)
    s = 1.0 / float(np.sqrt(H))
    u = lambda k, shape: jax.random.uniform(k, shape, jnp.float32, -s, s)
    p = {
        "w_ir": u(ks[0], (H, H)), "w_iz": u(ks[1], (H, H)), "w_in": u(ks[2], (H, H)),
        "w_hr": u(ks[3], (H, H)), "w_hz": u(ks[4], (H, H)), "w_hn": u(ks[5], (H, H)),
        "b_ir": u(ks[6], (1, H)), "b_iz": u(ks[7], (1, H)), "b_in": u(ks[8], (1, H)),
        "b_hr": u(ks[9], (1, H)), "b_hz": u(ks[10], (1, H)), "b_hn": u(ks[11], (1, H)),
        # Attention: v (1,1,H) -> (1,H); W (1,H,E+H) split into enc / dec halves.
        "v_att": 0.1 * jax.random.normal(ks[12], (1, H), jnp.float32),
        "w_att_e": 0.1 * jax.random.normal(ks[13], (H, E), jnp.float32),
        "w_att_d": 0.1 * jax.random.normal(ks[14], (H, H), jnp.float32),
        # Pointer: v (1,1,H) -> (1,H); W (1,H,H+E) split into enc / context halves.
        "v_ptr": 0.1 * jax.random.normal(ks[15], (1, H), jnp.float32),
        "w_ptr_e": 0.1 * jax.random.normal(ks[16], (H, E), jnp.float32),
        "w_ptr_c": 0.1 * jax.random.normal(ks[17], (H, E), jnp.float32),
    }
    return p


if __name__ == "__main__":
    # Pointer's final bmm requires encoder_hidden_size == decoder_hidden_size.
    B, E, H, S = 16, 32, 32, 8
    key = jax.random.PRNGKey(0)
    k_enc, k_dec, k_hh, k_par = jax.random.split(key, 4)

    encoder_hidden = jax.random.normal(k_enc, (B, E, S), jnp.float32)   # (B, E, S)
    decoder_hidden = jax.random.normal(k_dec, (B, H, 1), jnp.float32)   # (B, H, 1)
    last_hh = jax.random.normal(k_hh, (1, B, H), jnp.float32)           # (layers, B, H)
    params = make_params(k_par, E, H)

    probs, new_hh = pointer_forward(encoder_hidden, decoder_hidden, last_hh, params)
    jax.block_until_ready((probs, new_hh))

    ref_probs, ref_hh = pointer_reference(encoder_hidden, decoder_hidden, last_hh, params)
    assert probs.shape == (B, S) and new_hh.shape == (1, B, H)
    # logits tolerance 5e-3: bf16 MXU inputs for the encoder projection + the
    # EUP approx reciprocal in the softmax; the GRU path stays full f32.
    np.testing.assert_allclose(np.asarray(probs), np.asarray(ref_probs), rtol=5e-3, atol=5e-3)
    np.testing.assert_allclose(np.asarray(new_hh), np.asarray(ref_hh), rtol=1e-4, atol=1e-5)

    print("KERNEL_OK")
</pallas_src>

<mosaic_0001>
module attributes {stable_mosaic.version = 11 : i64} {
  func.func @pointer_kernel(%arg0: i32, %arg1: memref<16x8x32xbf16, #tpu.memory_space<vmem>>, %arg2: memref<16x64xf32, #tpu.memory_space<vmem>>, %arg3: memref<64x128xf32, #tpu.memory_space<vmem>>, %arg4: memref<1x128xf32, #tpu.memory_space<vmem>>, %arg5: memref<32x64xbf16, #tpu.memory_space<vmem>>, %arg6: memref<32x32xf32, #tpu.memory_space<vmem>>, %arg7: memref<32x32xf32, #tpu.memory_space<vmem>>, %arg8: memref<1x32xf32, #tpu.memory_space<vmem>>, %arg9: memref<1x32xf32, #tpu.memory_space<vmem>>, %arg10: memref<16x8xf32, #tpu.memory_space<vmem>>, %arg11: memref<16x32xf32, #tpu.memory_space<vmem>>) attributes {dimension_semantics = [#tpu.dimension_semantics<parallel>], iteration_bounds = array<i64: 1>, scalar_prefetch = 0 : i64, scratch_operands = 0 : i64, tpu.core_type = #tpu.core_type<tc>, window_params = [{transform_indices = @transform_0, window_bounds = array<i64: 16, 8, 32>}, {transform_indices = @transform_1, window_bounds = array<i64: 16, 64>}, {pipeline_mode = #tpu.pipeline_mode<synchronous>, transform_indices = @transform_2, window_bounds = array<i64: 64, 128>}, {pipeline_mode = #tpu.pipeline_mode<synchronous>, transform_indices = @transform_3, window_bounds = array<i64: 1, 128>}, {pipeline_mode = #tpu.pipeline_mode<synchronous>, transform_indices = @transform_4, window_bounds = array<i64: 32, 64>}, {pipeline_mode = #tpu.pipeline_mode<synchronous>, transform_indices = @transform_5, window_bounds = array<i64: 32, 32>}, {pipeline_mode = #tpu.pipeline_mode<synchronous>, transform_indices = @transform_6, window_bounds = array<i64: 32, 32>}, {pipeline_mode = #tpu.pipeline_mode<synchronous>, transform_indices = @transform_7, window_bounds = array<i64: 1, 32>}, {pipeline_mode = #tpu.pipeline_mode<synchronous>, transform_indices = @transform_8, window_bounds = array<i64: 1, 32>}, {transform_indices = @transform_9, window_bounds = array<i64: 16, 8>}, {transform_indices = @transform_10, window_bounds = array<i64: 16, 32>}]} {
    %c0 = arith.constant 0 : index
    %c0_0 = arith.constant 0 : index
    %0 = vector.load %arg2[%c0, %c0_0] : memref<16x64xf32, #tpu.memory_space<vmem>>, vector<16x64xf32>
    %1 = vector.extract_strided_slice %0 {offsets = [0, 32], sizes = [16, 32], strides = [1, 1]} : vector<16x64xf32> to vector<16x32xf32>
    %c0_1 = arith.constant 0 : index
    %c0_2 = arith.constant 0 : index
    %2 = vector.load %arg3[%c0_1, %c0_2] : memref<64x128xf32, #tpu.memory_space<vmem>>, vector<64x128xf32>
    %cst = arith.constant dense<0.000000e+00> : vector<16x128xf32>
    %3 = tpu.matmul %0, %2, %cst {dimension_numbers = #tpu.dot_dimension_numbers<[1], [0], [0], [1], [0, 0, 1, 1], [], []>} : vector<16x64xf32>, vector<64x128xf32>, vector<16x128xf32> -> vector<16x128xf32>
    %c0_3 = arith.constant 0 : index
    %c0_4 = arith.constant 0 : index
    %4 = vector.load %arg4[%c0_3, %c0_4] : memref<1x128xf32, #tpu.memory_space<vmem>>, vector<1x128xf32>
    %5 = vector.broadcast %4 : vector<1x128xf32> to vector<16x128xf32>
    %6 = arith.addf %3, %5 : vector<16x128xf32>
    %7 = vector.extract_strided_slice %6 {offsets = [0, 0], sizes = [16, 32], strides = [1, 1]} : vector<16x128xf32> to vector<16x32xf32>
    %8 = arith.negf %7 : vector<16x32xf32>
    %9 = math.exp %8 : vector<16x32xf32>
    %cst_5 = arith.constant 1.000000e+00 : f32
    %10 = vector.broadcast %cst_5 : f32 to vector<16x32xf32>
    %11 = arith.addf %10, %9 : vector<16x32xf32>
    %12 = arith.divf %10, %11 : vector<16x32xf32>
    %13 = vector.extract_strided_slice %6 {offsets = [0, 32], sizes = [16, 32], strides = [1, 1]} : vector<16x128xf32> to vector<16x32xf32>
    %14 = arith.negf %13 : vector<16x32xf32>
    %15 = math.exp %14 : vector<16x32xf32>
    %cst_6 = arith.constant 1.000000e+00 : f32
    %16 = vector.broadcast %cst_6 : f32 to vector<16x32xf32>
    %17 = arith.addf %16, %15 : vector<16x32xf32>
    %18 = arith.divf %16, %17 : vector<16x32xf32>
    %19 = vector.extract_strided_slice %6 {offsets = [0, 64], sizes = [16, 32], strides = [1, 1]} : vector<16x128xf32> to vector<16x32xf32>
    %20 = vector.extract_strided_slice %6 {offsets = [0, 96], sizes = [16, 32], strides = [1, 1]} : vector<16x128xf32> to vector<16x32xf32>
    %21 = arith.mulf %12, %20 : vector<16x32xf32>
    %22 = arith.addf %19, %21 : vector<16x32xf32>
    %23 = math.tanh %22 : vector<16x32xf32>
    %cst_7 = arith.constant 1.000000e+00 : f32
    %24 = vector.broadcast %cst_7 : f32 to vector<16x32xf32>
    %25 = arith.subf %24, %18 : vector<16x32xf32>
    %26 = arith.mulf %25, %23 : vector<16x32xf32>
    %27 = arith.mulf %18, %1 : vector<16x32xf32>
    %28 = arith.addf %26, %27 : vector<16x32xf32>
    %c0_8 = arith.constant 0 : index
    %c0_9 = arith.constant 0 : index
    %29 = vector.load %arg11[%c0_8, %c0_9] : memref<16x32xf32, #tpu.memory_space<vmem>>, vector<16x32xf32>
    tpu.vector_store %arg11[%c0_8, %c0_9], %28 {strides = array<i32>} : memref<16x32xf32, #tpu.memory_space<vmem>>, vector<16x32xf32>,
    %c0_10 = arith.constant 0 : index
    %c0_11 = arith.constant 0 : index
    %c0_12 = arith.constant 0 : index
    %30 = vector.load %arg1[%c0_10, %c0_11, %c0_12] : memref<16x8x32xbf16, #tpu.memory_space<vmem>>, vector<16x8x32xbf16>
    %31 = vector.shape_cast %30 : vector<16x8x32xbf16> to vector<128x32xbf16>
    %c0_13 = arith.constant 0 : index
    %c0_14 = arith.constant 0 : index
    %32 = vector.load %arg5[%c0_13, %c0_14] : memref<32x64xbf16, #tpu.memory_space<vmem>>, vector<32x64xbf16>
    %cst_15 = arith.constant dense<0.000000e+00> : vector<128x64xf32>
    %33 = tpu.matmul %31, %32, %cst_15 {dimension_numbers = #tpu.dot_dimension_numbers<[1], [0], [0], [1], [0, 0, 1, 1], [], []>} : vector<128x32xbf16>, vector<32x64xbf16>, vector<128x64xf32> -> vector<128x64xf32>
    %34 = vector.shape_cast %33 : vector<128x64xf32> to vector<16x8x64xf32>
    %35 = vector.extract_strided_slice %34 {offsets = [0, 0, 0], sizes = [16, 8, 32], strides = [1, 1, 1]} : vector<16x8x64xf32> to vector<16x8x32xf32>
    %36 = vector.extract_strided_slice %34 {offsets = [0, 0, 32], sizes = [16, 8, 32], strides = [1, 1, 1]} : vector<16x8x64xf32> to vector<16x8x32xf32>
    %c0_16 = arith.constant 0 : index
    %c0_17 = arith.constant 0 : index
    %37 = vector.load %arg6[%c0_16, %c0_17] : memref<32x32xf32, #tpu.memory_space<vmem>>, vector<32x32xf32>
    %cst_18 = arith.constant dense<0.000000e+00> : vector<16x32xf32>
    %38 = tpu.matmul %28, %37, %cst_18 {dimension_numbers = #tpu.dot_dimension_numbers<[1], [0], [0], [1], [0, 0, 1, 1], [], []>} : vector<16x32xf32>, vector<32x32xf32>, vector<16x32xf32> -> vector<16x32xf32>
    %39 = vector.shape_cast %38 : vector<16x32xf32> to vector<16x1x32xf32>
    %40 = vector.broadcast %39 : vector<16x1x32xf32> to vector<16x8x32xf32>
    %41 = arith.addf %35, %40 : vector<16x8x32xf32>
    %42 = math.tanh %41 : vector<16x8x32xf32>
    %c0_19 = arith.constant 0 : index
    %c0_20 = arith.constant 0 : index
    %43 = vector.load %arg8[%c0_19, %c0_20] : memref<1x32xf32, #tpu.memory_space<vmem>>, vector<1x32xf32>
    %44 = vector.shape_cast %43 : vector<1x32xf32> to vector<1x1x32xf32>
    %45 = vector.broadcast %44 : vector<1x1x32xf32> to vector<16x8x32xf32>
    %46 = arith.mulf %42, %45 : vector<16x8x32xf32>
    %cst_21 = arith.constant dense<0.000000e+00> : vector<16x8xf32>
    %47 = vector.multi_reduction <add>, %46, %cst_21 [2] : vector<16x8x32xf32> to vector<16x8xf32>
    %cst_22 = arith.constant dense<0xFF800000> : vector<16xf32>
    %48 = vector.multi_reduction <maximumf>, %47, %cst_22 [1] : vector<16x8xf32> to vector<16xf32>
    %49 = vector.shape_cast %48 : vector<16xf32> to vector<16x1xf32>
    %50 = vector.broadcast %49 : vector<16x1xf32> to vector<16x8xf32>
    %51 = arith.subf %47, %50 : vector<16x8xf32>
    %52 = math.exp %51 : vector<16x8xf32>
    %cst_23 = arith.constant dense<0.000000e+00> : vector<16xf32>
    %53 = vector.multi_reduction <add>, %52, %cst_23 [1] : vector<16x8xf32> to vector<16xf32>
    %54 = vector.shape_cast %53 : vector<16xf32> to vector<16x1xf32>
    %55 = tpu.reciprocal %54 {approx = true} : vector<16x1xf32> -> vector<16x1xf32>
    %56 = vector.broadcast %55 : vector<16x1xf32> to vector<16x8xf32>
    %57 = arith.mulf %52, %56 : vector<16x8xf32>
    %58 = vector.shape_cast %57 : vector<16x8xf32> to vector<16x8x1xf32>
    %59 = arith.extf %30 : vector<16x8x32xbf16> to vector<16x8x32xf32>
    %60 = vector.broadcast %58 : vector<16x8x1xf32> to vector<16x8x32xf32>
    %61 = arith.mulf %60, %59 : vector<16x8x32xf32>
    %cst_24 = arith.constant dense<0.000000e+00> : vector<16x32xf32>
    %62 = vector.multi_reduction <add>, %61, %cst_24 [1] : vector<16x8x32xf32> to vector<16x32xf32>
    %c0_25 = arith.constant 0 : index
    %c0_26 = arith.constant 0 : index
    %63 = vector.load %arg7[%c0_25, %c0_26] : memref<32x32xf32, #tpu.memory_space<vmem>>, vector<32x32xf32>
    %cst_27 = arith.constant dense<0.000000e+00> : vector<16x32xf32>
    %64 = tpu.matmul %62, %63, %cst_27 {dimension_numbers = #tpu.dot_dimension_numbers<[1], [0], [0], [1], [0, 0, 1, 1], [], []>} : vector<16x32xf32>, vector<32x32xf32>, vector<16x32xf32> -> vector<16x32xf32>
    %65 = vector.shape_cast %64 : vector<16x32xf32> to vector<16x1x32xf32>
    %66 = vector.broadcast %65 : vector<16x1x32xf32> to vector<16x8x32xf32>
    %67 = arith.addf %36, %66 : vector<16x8x32xf32>
    %68 = math.tanh %67 : vector<16x8x32xf32>
    %c0_28 = arith.constant 0 : index
    %c0_29 = arith.constant 0 : index
    %69 = vector.load %arg9[%c0_28, %c0_29] : memref<1x32xf32, #tpu.memory_space<vmem>>, vector<1x32xf32>
    %70 = vector.shape_cast %69 : vector<1x32xf32> to vector<1x1x32xf32>
    %71 = vector.broadcast %70 : vector<1x1x32xf32> to vector<16x8x32xf32>
    %72 = arith.mulf %68, %71 : vector<16x8x32xf32>
    %cst_30 = arith.constant dense<0.000000e+00> : vector<16x8xf32>
    %73 = vector.multi_reduction <add>, %72, %cst_30 [2] : vector<16x8x32xf32> to vector<16x8xf32>
    %c0_31 = arith.constant 0 : index
    %c0_32 = arith.constant 0 : index
    %74 = vector.load %arg10[%c0_31, %c0_32] : memref<16x8xf32, #tpu.memory_space<vmem>>, vector<16x8xf32>
    tpu.vector_store %arg10[%c0_31, %c0_32], %73 {strides = array<i32>} : memref<16x8xf32, #tpu.memory_space<vmem>>, vector<16x8xf32>,
    return
  }
  func.func @transform_0(%arg0: i32) -> (i32, i32, i32) {
    %c0_i32 = arith.constant 0 : i32
    %c0_i32_0 = arith.constant 0 : i32
    %c0_i32_1 = arith.constant 0 : i32
    return %arg0, %c0_i32, %c0_i32_0 : i32, i32, i32
  }
  func.func @transform_1(%arg0: i32) -> (i32, i32) {
    %c0_i32 = arith.constant 0 : i32
    %c0_i32_0 = arith.constant 0 : i32
    return %arg0, %c0_i32 : i32, i32
  }
  func.func @transform_2(%arg0: i32) -> (i32, i32) {
    %c0_i32 = arith.constant 0 : i32
    %c0_i32_0 = arith.constant 0 : i32
    %c0_i32_1 = arith.constant 0 : i32
    return %c0_i32, %c0_i32_0 : i32, i32
  }
  func.func @transform_3(%arg0: i32) -> (i32, i32) {
    %c0_i32 = arith.constant 0 : i32
    %c0_i32_0 = arith.constant 0 : i32
    %c0_i32_1 = arith.constant 0 : i32
    return %c0_i32, %c0_i32_0 : i32, i32
  }
  func.func @transform_4(%arg0: i32) -> (i32, i32) {
    %c0_i32 = arith.constant 0 : i32
    %c0_i32_0 = arith.constant 0 : i32
    %c0_i32_1 = arith.constant 0 : i32
    return %c0_i32, %c0_i32_0 : i32, i32
  }
  func.func @transform_5(%arg0: i32) -> (i32, i32) {
    %c0_i32 = arith.constant 0 : i32
    %c0_i32_0 = arith.constant 0 : i32
    %c0_i32_1 = arith.constant 0 : i32
    return %c0_i32, %c0_i32_0 : i32, i32
  }
  func.func @transform_6(%arg0: i32) -> (i32, i32) {
    %c0_i32 = arith.constant 0 : i32
    %c0_i32_0 = arith.constant 0 : i32
    %c0_i32_1 = arith.constant 0 : i32
    return %c0_i32, %c0_i32_0 : i32, i32
  }
  func.func @transform_7(%arg0: i32) -> (i32, i32) {
    %c0_i32 = arith.constant 0 : i32
    %c0_i32_0 = arith.constant 0 : i32
    %c0_i32_1 = arith.constant 0 : i32
    return %c0_i32, %c0_i32_0 : i32, i32
  }
  func.func @transform_8(%arg0: i32) -> (i32, i32) {
    %c0_i32 = arith.constant 0 : i32
    %c0_i32_0 = arith.constant 0 : i32
    %c0_i32_1 = arith.constant 0 : i32
    return %c0_i32, %c0_i32_0 : i32, i32
  }
  func.func @transform_9(%arg0: i32) -> (i32, i32) {
    %c0_i32 = arith.constant 0 : i32
    %c0_i32_0 = arith.constant 0 : i32
    return %arg0, %c0_i32 : i32, i32
  }
  func.func @transform_10(%arg0: i32) -> (i32, i32) {
    %c0_i32 = arith.constant 0 : i32
    %c0_i32_0 = arith.constant 0 : i32
    return %arg0, %c0_i32 : i32, i32
  }
}

</mosaic_0001>

<llo_original>
// kernel: tpu_custom_call.1
$region0: #{tpu_custom_call.1}
  #allocation0 [shape = 'u32[]', space=smem, size = 0x4, offset = 0x4, fixed_abs, tag = 'smem constant byte address 0x4 - core index']
  #allocation1 [shape = 'u32[144,128]{1,0:T(1,128)}', space=vmem, size = 0x12000, scoped, tag = 'internal scratch']
  %s0 = inlined_call_operand.hbm [shape: bf16[16,8,32], index: 0, kind: input, shape index: {}]
  %s1 = inlined_call_operand.hbm [shape: f32[16,64], index: 1, kind: input, shape index: {}]
  %s2 = inlined_call_operand.hbm [shape: f32[64,128], index: 2, kind: input, shape index: {}]
  %s3 = inlined_call_operand.vmem [shape: f32[1,128], index: 3, kind: input, shape index: {}]
  %s4 = inlined_call_operand.hbm [shape: bf16[32,64], index: 4, kind: input, shape index: {}]
  %s5 = inlined_call_operand.hbm [shape: f32[32,32], index: 5, kind: input, shape index: {}]
  %s6 = inlined_call_operand.hbm [shape: f32[32,32], index: 6, kind: input, shape index: {}]
  %s7 = inlined_call_operand.vmem [shape: f32[1,32], index: 7, kind: input, shape index: {}]
  %s8 = inlined_call_operand.vmem [shape: f32[1,32], index: 8, kind: input, shape index: {}]
  %s9 = inlined_call_operand.vmem [shape: f32[16,8], index: 9, kind: output, shape index: {0}]
  %s10 = inlined_call_operand.hbm [shape: f32[16,32], index: 10, kind: output, shape index: {1}]
  %11 = xla_tuple %s9, %s10
  %s12 = sld [smem:[#allocation0]]
  $region78: #{tpu_custom_call.1} parent=0
    _
  %s14 = ssub.s32 1, %s12
  %s15 = scalar_select 0, %s14, %s12
  $region1: #{tpu_custom_call.1} parent=0
    #allocation2 [shape = 'u8[32768]{0}', space=vmem, size = 0x8000, scoped, tag = 'input window, operand 0, single buffered']
    #allocation3 [shape = 's32[1]{0}', space=sflag, size = 0x4, scoped, tag = 'scoped memory for tpu_custom_call.1']
    #allocation4 [shape = 's32[1]{0}', space=sflag, size = 0x4, scoped, tag = 'scoped memory for tpu_custom_call.1']
    #allocation5 [shape = 'u8[8192]{0}', space=vmem, size = 0x2000, scoped, tag = 'input window, operand 1, single buffered']
    #allocation6 [shape = 's32[1]{0}', space=sflag, size = 0x4, scoped, tag = 'scoped memory for tpu_custom_call.1']
    #allocation7 [shape = 'u8[32768]{0}', space=vmem, size = 0x8000, scoped, tag = 'input window, operand 2, single buffered']
    #allocation8 [shape = 'u8[8192]{0}', space=vmem, size = 0x2000, scoped, tag = 'input window, operand 4, single buffered']
    #allocation9 [shape = 's32[1]{0}', space=sflag, size = 0x4, scoped, tag = 'scoped memory for tpu_custom_call.1']
    #allocation10 [shape = 'u8[16384]{0}', space=vmem, size = 0x4000, scoped, tag = 'input window, operand 5, single buffered']
    #allocation11 [shape = 'u8[16384]{0}', space=vmem, size = 0x4000, scoped, tag = 'input window, operand 6, single buffered']
    #allocation12 [shape = 's32[1]{0}', space=sflag, size = 0x4, scoped, tag = 'scoped memory for tpu_custom_call.1']
    #allocation13 [shape = 'u8[8192]{0}', space=vmem, size = 0x2000, scoped, tag = 'output window, operand 1, single buffered']
    %16 = vsyncpa [#allocation3], 0
    %17 = vsyncpa [#allocation6], 0
    %18 = vsyncpa [#allocation9], 0
    %19 = vsyncpa [#allocation12], 0
    %20 = vsyncpa [#allocation4], 0
    // Predicated region
    $region2: #{tpu_custom_call.1} parent=1 // pred_check
      _
    $region3: #{tpu_custom_call.1} parent=1 // pred_check_branch
      %22 = sbr.rel (0) target = $region5
    $region4: #{tpu_custom_call.1} parent=1 // pred_region
      %s24 = ssub.s32 1024, 1024
      %25 = vsyncadd [#allocation3], %s24
      %s26 = sshll.u32 [#allocation2], 4
      %s27 = int_to_ptr.vmem [resolvable:$true] %s26
      %32 = dma.hbm_to_vmem [thread:$0]  %s0, 1024, %s27, [#allocation3], 64, 64, 4
    $region5: #{tpu_custom_call.1} parent=1 // pred_fallthru
      _
    // Predicated region
    $region6: #{tpu_custom_call.1} parent=1 // pred_check
      _
    $region7: #{tpu_custom_call.1} parent=1 // pred_check_branch
      %34 = sbr.rel (0) target = $region9
    $region8: #{tpu_custom_call.1} parent=1 // pred_region
      %s36 = ssub.s32 256, 256
      %37 = vsyncadd [#allocation6], %s36
      %s38 = sshll.u32 [#allocation5], 4
      %s39 = int_to_ptr.vmem [resolvable:$true] %s38
      %44 = dma.hbm_to_vmem [thread:$0]  %s1, 256, %s39, [#allocation6], 128, 128, 8
    $region9: #{tpu_custom_call.1} parent=1 // pred_fallthru
      _
    // Predicated region
    $region10: #{tpu_custom_call.1} parent=1 // pred_check
      _
    $region11: #{tpu_custom_call.1} parent=1 // pred_check_branch
      %46 = sbr.rel (0) target = $region13
    $region12: #{tpu_custom_call.1} parent=1 // pred_region
      %s48 = ssub.s32 1024, 1024
      %49 = vsyncadd [#allocation6], %s48
      %s50 = sshll.u32 [#allocation7], 4
      %s51 = int_to_ptr.vmem [resolvable:$true] %s50
      %56 = dma.hbm_to_vmem [thread:$0]  %s2, 1024, %s51, [#allocation6], 128, 128, 8
    $region13: #{tpu_custom_call.1} parent=1 // pred_fallthru
      _
    // Predicated region
    $region14: #{tpu_custom_call.1} parent=1 // pred_check
      _
    $region15: #{tpu_custom_call.1} parent=1 // pred_check_branch
      %58 = sbr.rel (0) target = $region17
    $region16: #{tpu_custom_call.1} parent=1 // pred_region
      _
    $region17: #{tpu_custom_call.1} parent=1 // pred_fallthru
      _
    // Predicated region
    $region18: #{tpu_custom_call.1} parent=1 // pred_check
      _
    $region19: #{tpu_custom_call.1} parent=1 // pred_check_branch
      %60 = sbr.rel (0) target = $region21
    $region20: #{tpu_custom_call.1} parent=1 // pred_region
      %s62 = ssub.s32 256, 256
      %63 = vsyncadd [#allocation9], %s62
      %s64 = sshll.u32 [#allocation8], 4
      %s65 = int_to_ptr.vmem [resolvable:$true] %s64
      %70 = dma.hbm_to_vmem [thread:$0]  %s4, 256, %s65, [#allocation9], 64, 64, 4
    $region21: #{tpu_custom_call.1} parent=1 // pred_fallthru
      _
    // Predicated region
    $region22: #{tpu_custom_call.1} parent=1 // pred_check
      _
    $region23: #{tpu_custom_call.1} parent=1 // pred_check_branch
      %72 = sbr.rel (0) target = $region25
    $region24: #{tpu_custom_call.1} parent=1 // pred_region
      %s74 = ssub.s32 512, 512
      %75 = vsyncadd [#allocation9], %s74
      %s76 = sshll.u32 [#allocation10], 4
      %s77 = int_to_ptr.vmem [resolvable:$true] %s76
      %82 = dma.hbm_to_vmem [thread:$0]  %s5, 512, %s77, [#allocation9], 128, 128, 8
    $region25: #{tpu_custom_call.1} parent=1 // pred_fallthru
      _
    // Predicated region
    $region26: #{tpu_custom_call.1} parent=1 // pred_check
      _
    $region27: #{tpu_custom_call.1} parent=1 // pred_check_branch
      %84 = sbr.rel (0) target = $region29
    $region28: #{tpu_custom_call.1} parent=1 // pred_region
      %s86 = ssub.s32 512, 512
      %87 = vsyncadd [#allocation12], %s86
      %s88 = sshll.u32 [#allocation11], 4
      %s89 = int_to_ptr.vmem [resolvable:$true] %s88
      %94 = dma.hbm_to_vmem [thread:$0]  %s6, 512, %s89, [#allocation12], 128, 128, 8
    $region29: #{tpu_custom_call.1} parent=1 // pred_fallthru
      _
    // Predicated region
    $region30: #{tpu_custom_call.1} parent=1 // pred_check
      _
    $region31: #{tpu_custom_call.1} parent=1 // pred_check_branch
      %96 = sbr.rel (0) target = $region33
    $region32: #{tpu_custom_call.1} parent=1 // pred_region
      _
    $region33: #{tpu_custom_call.1} parent=1 // pred_fallthru
      _
    // Predicated region
    $region34: #{tpu_custom_call.1} parent=1 // pred_check
      _
    $region35: #{tpu_custom_call.1} parent=1 // pred_check_branch
      %98 = sbr.rel (0) target = $region37
    $region36: #{tpu_custom_call.1} parent=1 // pred_region
      _
    $region37: #{tpu_custom_call.1} parent=1 // pred_fallthru
      _
    // Predicated region
    $region38: #{tpu_custom_call.1} parent=1 // pred_check
      _
    $region39: #{tpu_custom_call.1} parent=1 // pred_check_branch
      %100 = sbr.rel (0) target = $region41
    $region40: #{tpu_custom_call.1} parent=1 // pred_region
      %101 = dma.done [#allocation3], 1024
    $region41: #{tpu_custom_call.1} parent=1 // pred_fallthru
      _
    // Predicated region
    $region42: #{tpu_custom_call.1} parent=1 // pred_check
      _
    $region43: #{tpu_custom_call.1} parent=1 // pred_check_branch
      %103 = sbr.rel (0) target = $region45
    $region44: #{tpu_custom_call.1} parent=1 // pred_region
      %104 = dma.done [#allocation6], 256
    $region45: #{tpu_custom_call.1} parent=1 // pred_fallthru
      _
    // Predicated region
    $region46: #{tpu_custom_call.1} parent=1 // pred_check
      _
    $region47: #{tpu_custom_call.1} parent=1 // pred_check_branch
      %106 = sbr.rel (0) target = $region49
    $region48: #{tpu_custom_call.1} parent=1 // pred_region
      %107 = dma.done [#allocation6], 1024
    $region49: #{tpu_custom_call.1} parent=1 // pred_fallthru
      _
    // Predicated region
    $region50: #{tpu_custom_call.1} parent=1 // pred_check
      _
    $region51: #{tpu_custom_call.1} parent=1 // pred_check_branch
      %109 = sbr.rel (0) target = $region53
    $region52: #{tpu_custom_call.1} parent=1 // pred_region
      %110 = dma.done [#allocation9], 256
    $region53: #{tpu_custom_call.1} parent=1 // pred_fallthru
      _
    // Predicated region
    $region54: #{tpu_custom_call.1} parent=1 // pred_check
      _
    $region55: #{tpu_custom_call.1} parent=1 // pred_check_branch
      %112 = sbr.rel (0) target = $region57
    $region56: #{tpu_custom_call.1} parent=1 // pred_region
      %113 = dma.done [#allocation9], 512
    $region57: #{tpu_custom_call.1} parent=1 // pred_fallthru
      _
    // Predicated region
    $region58: #{tpu_custom_call.1} parent=1 // pred_check
      _
    $region59: #{tpu_custom_call.1} parent=1 // pred_check_branch
      %115 = sbr.rel (0) target = $region61
    $region60: #{tpu_custom_call.1} parent=1 // pred_region
      %116 = dma.done [#allocation12], 512
    $region61: #{tpu_custom_call.1} parent=1 // pred_fallthru
      _
    %v118 = vld [vmem:[#allocation5] sm:$0xff]
    %v119 = vld [vmem:[#allocation5 + $0x8] sm:$0xff]
    %v120 = vld [vmem:[#allocation7] sm:$0xff]
    %v121 = vld [vmem:[#allocation7 + $0x8] sm:$0xff]
    %v122 = vld [vmem:[#allocation7 + $0x10] sm:$0xff]
    %v123 = vld [vmem:[#allocation7 + $0x18] sm:$0xff]
    %v124 = vld [vmem:[#allocation7 + $0x20] sm:$0xff]
    %v125 = vld [vmem:[#allocation7 + $0x28] sm:$0xff]
    %v126 = vld [vmem:[#allocation7 + $0x30] sm:$0xff]
    %v127 = vld [vmem:[#allocation7 + $0x38] sm:$0xff]
    %v128 = vld [vmem:[%s3] sm:$0x1]
    %v130 = vlaneseq
    %v131 = vshrl.u32 %v130, 7
    %v132 = vsub.s32 0, %v131
    %v133 = vrot.slane %v128, %v132
    %vm135 = vcmask 523264
    %v137 = vsel %vm135, %v118, 0
    %v140 = vsel %vm135, %v119, 0
    %142 = vmatprep.subr.mxu0 0.0
    %143 = vmatpush1.msra.mxu0 %v120
    %144 = vmatprep.subr.mxu0 0.0
    %145 = vmatpush1.msra.mxu0 %v121
    %146 = vmatprep.subr.mxu0 0.0
    %147 = vmatpush1.msra.mxu0 %v122
    %148 = vmatprep.subr.mxu0 0.0
    %149 = vmatpush1.msra.mxu0 %v123
    %150 = vmatprep.subr.mxu0 0.0
    %151 = vmatpush1.msra.mxu0 %v124
    %152 = vmatprep.subr.mxu0 0.0
    %153 = vmatpush1.msra.mxu0 %v125
    %154 = vmatprep.subr.mxu0 0.0
    %155 = vmatpush1.msra.mxu0 %v126
    %156 = vmatprep.subr.mxu0 0.0
    %157 = vmatpush1.msra.mxu0 %v127
    %158 = vmatprep.subr.mxu0 0.0
    %159 = vmatpush1.msra.mxu0 0.0
    %160 = vmatprep.subr.mxu0 0.0
    %161 = vmatpush1.msra.mxu0 0.0
    %162 = vmatprep.subr.mxu0 0.0
    %163 = vmatpush1.msra.mxu0 0.0
    %164 = vmatprep.subr.mxu0 0.0
    %165 = vmatpush1.msra.mxu0 0.0
    %166 = vmatprep.subr.mxu0 0.0
    %167 = vmatpush1.msra.mxu0 0.0
    %168 = vmatprep.subr.mxu0 0.0
    %169 = vmatpush1.msra.mxu0 0.0
    %170 = vmatprep.subr.mxu0 0.0
    %171 = vmatpush1.msra.mxu0 0.0
    %172 = vmatprep.subr.mxu0 0.0
    %173 = vmatpush1.msra.mxu0 0.0
    %174 = vmatprep.subr.mxu0 0.0
    %175 = vmatpush1.msra.mxu0 0.0
    %176 = vmatprep.subr.mxu0 0.0
    %177 = vmatpush1.msra.mxu0 0.0
    %178 = vmatprep.subr.mxu0 0.0
    %179 = vmatpush1.msra.mxu0 0.0
    %180 = vmatprep.subr.mxu0 0.0
    %181 = vmatpush1.msra.mxu0 0.0
    %182 = vmatprep.subr.mxu0 0.0
    %183 = vmatpush1.msra.mxu0 0.0
    %184 = vmatprep.subr.mxu0 0.0
    %185 = vmatpush1.msra.mxu0 0.0
    %186 = vmatprep.subr.mxu0 0.0
    %187 = vmatpush1.msra.mxu0 0.0
    %188 = vmatprep.subr.mxu0 0.0
    %189 = vmatpush1.msra.mxu0 0.0
    %190 = vmatprep.subr.mxu0 0.0
    %191 = vmatpush1.msra.mxu0 0.0
    %192 = vmatprep.subr.mxu0 0.0
    %193 = vmatpush1.msra.mxu0 0.0
    %194 = vmatprep.subr.mxu0 0.0
    %195 = vmatpush1.msra.mxu0 0.0
    %196 = vmatprep.subr.mxu0 0.0
    %197 = vmatpush1.msra.mxu0 0.0
    %198 = vmatprep.subr.mxu0 0.0
    %199 = vmatpush1.msra.mxu0 0.0
    %200 = vmatprep.subr.mxu0 0.0
    %201 = vmatpush1.msra.mxu0 0.0
    %202 = vmatprep.subr.mxu0 0.0
    %203 = vmatpush1.msra.mxu0 0.0
    %204 = vmatprep.subr.mxu0 0.0
    %205 = vmatpush1.msra.mxu0 0.0
    %206 = vmatprep.mubr.f32.mxu0 0.0
    %207 = vmatmul.mubr.f32.gmra.mrb[0].mxu0 %v137
    %v208 = vpop.f32.mrb[0].mxu0
    %v209 = vadd.f32 %v133, %v208
    %v210 = vpop.f32.mrb[0].mxu0
    %211 = vmatprep.mubr.f32.mxu0 0.0
    %212 = vmatmul.mubr.f32.gmra.mrb[0].mxu0 %v140
    %v213 = vpop.f32.mrb[0].mxu0
    %v214 = vadd.f32 %v133, %v213
    %v215 = vpop.f32.mrb[0].mxu0
    %216 = vdwg.mxu0
    %v217 = vxor.u32 %v209, 2147483648
    %v218 = vxor.u32 %v214, 2147483648
    %v219 = vmul.f32 %v217, 1.442695
    %v220 = vpow.pop %v219
    %v221 = vmul.f32 %v218, 1.442695
    %v222 = vpow.pop %v221
    %v223 = vadd.f32 %v220, 1.0
    %v224 = vadd.f32 %v222, 1.0
    %v225 = vrcp.pop %v223
    %v226 = vmul.f32 1.0, %v225
    %v227 = vrcp.pop %v224
    %v228 = vmul.f32 1.0, %v227
    %231 = vrot.lane.b32.xlu0 %v209, 32
    %v232 = vpop.permute.xlu0 %231
    %233 = vrot.lane.b32.xlu0 %v214, 32
    %v234 = vpop.permute.xlu0 %233
    %v237 = vmul.f32 %v226, %v232
    %v238 = vmul.f32 %v228, %v234
    %241 = vrot.lane.b32.xlu0 %v237, 64
    %v242 = vpop.permute.xlu0 %241
    %243 = vrot.lane.b32.xlu0 %v238, 64
    %v244 = vpop.permute.xlu0 %243
    %v247 = vadd.f32 %v209, %v242
    %v248 = vadd.f32 %v214, %v244
    %v249 = vtanh.pop %v247
    %v250 = vtanh.pop %v248
    %v251 = vsub.f32 1.0, %v226
    %v252 = vsub.f32 1.0, %v228
    %255 = vrot.lane.b32.xlu0 %v249, 96
    %v256 = vpop.permute.xlu0 %255
    %257 = vrot.lane.b32.xlu0 %v250, 96
    %v258 = vpop.permute.xlu0 %257
    %v261 = vmul.f32 %v251, %v256
    %v262 = vmul.f32 %v252, %v258
    %v263 = vmul.f32 %v226, %v118
    %v264 = vmul.f32 %v228, %v119
    %v265 = vadd.f32 %v261, %v263
    %v266 = vadd.f32 %v262, %v264
    %269 = vrot.lane.b32.xlu0 %v265, 96
    %v270 = vpop.permute.xlu0 %269
    %271 = vrot.lane.b32.xlu0 %v266, 96
    %v272 = vpop.permute.xlu0 %271
    %vm275 = vcmask 261120
    %276 = vst.msk [vmem:[#allocation13] sm:$0xff] %vm275, %v270
    %277 = vst.msk [vmem:[#allocation13 + $0x8] sm:$0xff] %vm275, %v272
    %v278 = vld [vmem:[#allocation2] sm:$0xf]
    %v279 = vld [vmem:[#allocation2 + $0x4] sm:$0xf]
    %v280 = vld [vmem:[#allocation2 + $0x8] sm:$0xf]
    %v281 = vld [vmem:[#allocation2 + $0xc] sm:$0xf]
    %v282 = vld [vmem:[#allocation2 + $0x10] sm:$0xf]
    %v283 = vld [vmem:[#allocation2 + $0x14] sm:$0xf]
    %v284 = vld [vmem:[#allocation2 + $0x18] sm:$0xf]
    %v285 = vld [vmem:[#allocation2 + $0x1c] sm:$0xf]
    %v286 = vld [vmem:[#allocation2 + $0x20] sm:$0xf]
    %v287 = vld [vmem:[#allocation2 + $0x24] sm:$0xf]
    %v288 = vld [vmem:[#allocation2 + $0x28] sm:$0xf]
    %v289 = vld [vmem:[#allocation2 + $0x2c] sm:$0xf]
    %v290 = vld [vmem:[#allocation2 + $0x30] sm:$0xf]
    %v291 = vld [vmem:[#allocation2 + $0x34] sm:$0xf]
    %v292 = vld [vmem:[#allocation2 + $0x38] sm:$0xf]
    %v293 = vld [vmem:[#allocation2 + $0x3c] sm:$0xf]
    %v294 = vld [vmem:[#allocation8] sm:$0xf]
    %v295 = vld [vmem:[#allocation8 + $0x4] sm:$0xf]
    %v296 = vld [vmem:[#allocation8 + $0x8] sm:$0xf]
    %v297 = vld [vmem:[#allocation8 + $0xc] sm:$0xf]
    %v314 = vunpack.c.l.b16 %v278
    %v315 = vunpack.c.l.b16 %v279
    %v316 = vunpack.c.l.b16 %v280
    %v317 = vunpack.c.l.b16 %v281
    %v318 = vunpack.c.l.b16 %v282
    %v319 = vunpack.c.l.b16 %v283
    %v320 = vunpack.c.l.b16 %v284
    %v321 = vunpack.c.l.b16 %v285
    %v322 = vunpack.c.l.b16 %v286
    %v323 = vunpack.c.l.b16 %v287
    %v324 = vunpack.c.l.b16 %v288
    %v325 = vunpack.c.l.b16 %v289
    %v326 = vunpack.c.l.b16 %v290
    %v327 = vunpack.c.l.b16 %v291
    %v328 = vunpack.c.l.b16 %v292
    %v329 = vunpack.c.l.b16 %v293
    %v330 = vpack.c.b16 %v315, %v314
    %v331 = vpack.c.b16 %v317, %v316
    %v332 = vpack.c.b16 %v319, %v318
    %v333 = vpack.c.b16 %v321, %v320
    %v334 = vpack.c.b16 %v323, %v322
    %v335 = vpack.c.b16 %v325, %v324
    %v336 = vpack.c.b16 %v327, %v326
    %v337 = vpack.c.b16 %v329, %v328
    %v342 = vunpack.c.l.b16 %v294
    %v343 = vunpack.c.l.b16 %v295
    %v344 = vunpack.c.l.b16 %v296
    %v345 = vunpack.c.l.b16 %v297
    %v346 = vpack.c.b16 %v343, %v342
    %v347 = vpack.c.b16 %v345, %v344
    %v351 = vsel %vm275, %v330, 0
    %v354 = vsel %vm275, %v331, 0
    %v357 = vsel %vm275, %v332, 0
    %v360 = vsel %vm275, %v333, 0
    %v363 = vsel %vm275, %v334, 0
    %v366 = vsel %vm275, %v335, 0
    %v369 = vsel %vm275, %v336, 0
    %v372 = vsel %vm275, %v337, 0
    %374 = vmatprep.subr.bf16.mxu0 0
    %375 = vmatpush1.bf16.msra.mxu0 %v346
    %376 = vmatprep.subr.bf16.mxu0 0
    %377 = vmatpush1.bf16.msra.mxu0 %v347
    %378 = vmatprep.subr.bf16.mxu0 0
    %379 = vmatpush1.bf16.msra.mxu0 0
    %380 = vmatprep.subr.bf16.mxu0 0
    %381 = vmatpush1.bf16.msra.mxu0 0
    %382 = vmatprep.subr.bf16.mxu0 0
    %383 = vmatpush1.bf16.msra.mxu0 0
    %384 = vmatprep.subr.bf16.mxu0 0
    %385 = vmatpush1.bf16.msra.mxu0 0
    %386 = vmatprep.subr.bf16.mxu0 0
    %387 = vmatpush1.bf16.msra.mxu0 0
    %388 = vmatprep.subr.bf16.mxu0 0
    %389 = vmatpush1.bf16.msra.mxu0 0
    %390 = vmatprep.subr.bf16.mxu0 0
    %391 = vmatpush1.bf16.msra.mxu0 0
    %392 = vmatprep.subr.bf16.mxu0 0
    %393 = vmatpush1.bf16.msra.mxu0 0
    %394 = vmatprep.subr.bf16.mxu0 0
    %395 = vmatpush1.bf16.msra.mxu0 0
    %396 = vmatprep.subr.bf16.mxu0 0
    %397 = vmatpush1.bf16.msra.mxu0 0
    %398 = vmatprep.subr.bf16.mxu0 0
    %399 = vmatpush1.bf16.msra.mxu0 0
    %400 = vmatprep.subr.bf16.mxu0 0
    %401 = vmatpush1.bf16.msra.mxu0 0
    %402 = vmatprep.subr.bf16.mxu0 0
    %403 = vmatpush1.bf16.msra.mxu0 0
    %404 = vmatprep.subr.bf16.mxu0 0
    %405 = vmatpush1.bf16.msra.mxu0 0
    %406 = vmatprep.mubr.bf16.mxu0 0
    %407 = vmatmul.mubr.bf16.gmra.mrb[0].mxu0 %v351
    %v408 = vpop.f32.mrb[0].mxu0
    %v409 = vadd.f32 0.0, %v408
    %v410 = vpop.f32.mrb[0].mxu0
    %v411 = vpop.f32.mrb[0].mxu0
    %v412 = vadd.f32 0.0, %v411
    %v413 = vpop.f32.mrb[0].mxu0
    %414 = vmatprep.mubr.bf16.mxu0 0
    %415 = vmatmul.mubr.bf16.gmra.mrb[0].mxu0 %v354
    %v416 = vpop.f32.mrb[0].mxu0
    %v417 = vadd.f32 0.0, %v416
    %v418 = vpop.f32.mrb[0].mxu0
    %v419 = vpop.f32.mrb[0].mxu0
    %v420 = vadd.f32 0.0, %v419
    %v421 = vpop.f32.mrb[0].mxu0
    %422 = vmatprep.mubr.bf16.mxu0 0
    %423 = vmatmul.mubr.bf16.gmra.mrb[0].mxu0 %v357
    %v424 = vpop.f32.mrb[0].mxu0
    %v425 = vadd.f32 0.0, %v424
    %v426 = vpop.f32.mrb[0].mxu0
    %v427 = vpop.f32.mrb[0].mxu0
    %v428 = vadd.f32 0.0, %v427
    %v429 = vpop.f32.mrb[0].mxu0
    %430 = vmatprep.mubr.bf16.mxu0 0
    %431 = vmatmul.mubr.bf16.gmra.mrb[0].mxu0 %v360
    %v432 = vpop.f32.mrb[0].mxu0
    %v433 = vadd.f32 0.0, %v432
    %v434 = vpop.f32.mrb[0].mxu0
    %v435 = vpop.f32.mrb[0].mxu0
    %v436 = vadd.f32 0.0, %v435
    %v437 = vpop.f32.mrb[0].mxu0
    %438 = vmatprep.mubr.bf16.mxu0 0
    %439 = vmatmul.mubr.bf16.gmra.mrb[0].mxu0 %v363
    %v440 = vpop.f32.mrb[0].mxu0
    %v441 = vadd.f32 0.0, %v440
    %v442 = vpop.f32.mrb[0].mxu0
    %v443 = vpop.f32.mrb[0].mxu0
    %v444 = vadd.f32 0.0, %v443
    %v445 = vpop.f32.mrb[0].mxu0
    %446 = vmatprep.mubr.bf16.mxu0 0
    %447 = vmatmul.mubr.bf16.gmra.mrb[0].mxu0 %v366
    %v448 = vpop.f32.mrb[0].mxu0
    %v449 = vadd.f32 0.0, %v448
    %v450 = vpop.f32.mrb[0].mxu0
    %v451 = vpop.f32.mrb[0].mxu0
    %v452 = vadd.f32 0.0, %v451
    %v453 = vpop.f32.mrb[0].mxu0
    %454 = vmatprep.mubr.bf16.mxu0 0
    %455 = vmatmul.mubr.bf16.gmra.mrb[0].mxu0 %v369
    %v456 = vpop.f32.mrb[0].mxu0
    %v457 = vadd.f32 0.0, %v456
    %v458 = vpop.f32.mrb[0].mxu0
    %v459 = vpop.f32.mrb[0].mxu0
    %v460 = vadd.f32 0.0, %v459
    %v461 = vpop.f32.mrb[0].mxu0
    %462 = vmatprep.mubr.bf16.mxu0 0
    %463 = vmatmul.mubr.bf16.gmra.mrb[0].mxu0 %v372
    %v464 = vpop.f32.mrb[0].mxu0
    %v465 = vadd.f32 0.0, %v464
    %v466 = vpop.f32.mrb[0].mxu0
    %v467 = vpop.f32.mrb[0].mxu0
    %v468 = vadd.f32 0.0, %v467
    %v469 = vpop.f32.mrb[0].mxu0
    %470 = vdwg.mxu0
    %v471 = vld [vmem:[#allocation10] sm:$0xff]
    %v472 = vld [vmem:[#allocation10 + $0x8] sm:$0xff]
    %v473 = vld [vmem:[#allocation10 + $0x10] sm:$0xff]
    %v474 = vld [vmem:[#allocation10 + $0x18] sm:$0xff]
    %v475 = vsel %vm275, %v270, 0
    %v477 = vsel %vm275, %v272, 0
    %479 = vmatprep.subr.mxu0 0.0
    %480 = vmatpush1.msra.mxu0 %v471
    %481 = vmatprep.subr.mxu0 0.0
    %482 = vmatpush1.msra.mxu0 %v472
    %483 = vmatprep.subr.mxu0 0.0
    %484 = vmatpush1.msra.mxu0 %v473
    %485 = vmatprep.subr.mxu0 0.0
    %486 = vmatpush1.msra.mxu0 %v474
    %487 = vmatprep.subr.mxu0 0.0
    %488 = vmatpush1.msra.mxu0 0.0
    %489 = vmatprep.subr.mxu0 0.0
    %490 = vmatpush1.msra.mxu0 0.0
    %491 = vmatprep.subr.mxu0 0.0
    %492 = vmatpush1.msra.mxu0 0.0
    %493 = vmatprep.subr.mxu0 0.0
    %494 = vmatpush1.msra.mxu0 0.0
    %495 = vmatprep.subr.mxu0 0.0
    %496 = vmatpush1.msra.mxu0 0.0
    %497 = vmatprep.subr.mxu0 0.0
    %498 = vmatpush1.msra.mxu0 0.0
    %499 = vmatprep.subr.mxu0 0.0
    %500 = vmatpush1.msra.mxu0 0.0
    %501 = vmatprep.subr.mxu0 0.0
    %502 = vmatpush1.msra.mxu0 0.0
    %503 = vmatprep.subr.mxu0 0.0
    %504 = vmatpush1.msra.mxu0 0.0
    %505 = vmatprep.subr.mxu0 0.0
    %506 = vmatpush1.msra.mxu0 0.0
    %507 = vmatprep.subr.mxu0 0.0
    %508 = vmatpush1.msra.mxu0 0.0
    %509 = vmatprep.subr.mxu0 0.0
    %510 = vmatpush1.msra.mxu0 0.0
    %511 = vmatprep.subr.mxu0 0.0
    %512 = vmatpush1.msra.mxu0 0.0
    %513 = vmatprep.subr.mxu0 0.0
    %514 = vmatpush1.msra.mxu0 0.0
    %515 = vmatprep.subr.mxu0 0.0
    %516 = vmatpush1.msra.mxu0 0.0
    %517 = vmatprep.subr.mxu0 0.0
    %518 = vmatpush1.msra.mxu0 0.0
    %519 = vmatprep.subr.mxu0 0.0
    %520 = vmatpush1.msra.mxu0 0.0
    %521 = vmatprep.subr.mxu0 0.0
    %522 = vmatpush1.msra.mxu0 0.0
    %523 = vmatprep.subr.mxu0 0.0
    %524 = vmatpush1.msra.mxu0 0.0
    %525 = vmatprep.subr.mxu0 0.0
    %526 = vmatpush1.msra.mxu0 0.0
    %527 = vmatprep.subr.mxu0 0.0
    %528 = vmatpush1.msra.mxu0 0.0
    %529 = vmatprep.subr.mxu0 0.0
    %530 = vmatpush1.msra.mxu0 0.0
    %531 = vmatprep.subr.mxu0 0.0
    %532 = vmatpush1.msra.mxu0 0.0
    %533 = vmatprep.subr.mxu0 0.0
    %534 = vmatpush1.msra.mxu0 0.0
    %535 = vmatprep.subr.mxu0 0.0
    %536 = vmatpush1.msra.mxu0 0.0
    %537 = vmatprep.subr.mxu0 0.0
    %538 = vmatpush1.msra.mxu0 0.0
    %539 = vmatprep.subr.mxu0 0.0
    %540 = vmatpush1.msra.mxu0 0.0
    %541 = vmatprep.subr.mxu0 0.0
    %542 = vmatpush1.msra.mxu0 0.0
    %543 = vmatprep.mubr.f32.mxu0 0.0
    %544 = vmatmul.mubr.f32.gmra.mrb[0].mxu0 %v475
    %v545 = vpop.f32.mrb[0].mxu0
    %v546 = vadd.f32 0.0, %v545
    %v547 = vpop.f32.mrb[0].mxu0
    %548 = vmatprep.mubr.f32.mxu0 0.0
    %549 = vmatmul.mubr.f32.gmra.mrb[0].mxu0 %v477
    %v550 = vpop.f32.mrb[0].mxu0
    %v551 = vadd.f32 0.0, %v550
    %v552 = vpop.f32.mrb[0].mxu0
    %553 = vdwg.mxu0
    %v556 = vcombine.high %v546, %v546
    %v558 = vunpack.c.l.s4 1966171168
    %v559 = vunpack.c.0.s8 %v558
    %v560 = vlaneseq
    %v561 = vshrl.u32 %v560, 7
    %v562 = vsub.s32 %v559, %v561
    %v563 = vrot.slane %v546, %v562
    %v565 = vunpack.c.l.s4 1966171168
    %v566 = vunpack.c.0.s8 %v565
    %v567 = vlaneseq
    %v568 = vshrl.u32 %v567, 7
    %v569 = vsub.s32 %v566, %v568
    %v570 = vrot.slane %v556, %v569
    %v571 = vcombine.high %v563, %v563
    %v572 = vcombine.high %v570, %v570
    %v574 = vunpack.c.l.s4 1966171168
    %v575 = vunpack.c.0.s8 %v574
    %v576 = vlaneseq
    %v577 = vshrl.u32 %v576, 7
    %v578 = vsub.s32 %v575, %v577
    %v579 = vrot.slane %v563, %v578
    %v581 = vunpack.c.l.s4 1966171168
    %v582 = vunpack.c.0.s8 %v581
    %v583 = vlaneseq
    %v584 = vshrl.u32 %v583, 7
    %v585 = vsub.s32 %v582, %v584
    %v586 = vrot.slane %v570, %v585
    %v588 = vunpack.c.l.s4 1966171168
    %v589 = vunpack.c.0.s8 %v588
    %v590 = vlaneseq
    %v591 = vshrl.u32 %v590, 7
    %v592 = vsub.s32 %v589, %v591
    %v593 = vrot.slane %v571, %v592
    %v595 = vunpack.c.l.s4 1966171168
    %v596 = vunpack.c.0.s8 %v595
    %v597 = vlaneseq
    %v598 = vshrl.u32 %v597, 7
    %v599 = vsub.s32 %v596, %v598
    %v600 = vrot.slane %v572, %v599
    %v601 = vcombine.high %v579, %v579
    %v602 = vcombine.high %v586, %v586
    %v603 = vcombine.high %v593, %v593
    %v604 = vcombine.high %v600, %v600
    %v605 = vcombine.high %v551, %v551
    %v607 = vunpack.c.l.s4 1966171168
    %v608 = vunpack.c.0.s8 %v607
    %v609 = vlaneseq
    %v610 = vshrl.u32 %v609, 7
    %v611 = vsub.s32 %v608, %v610
    %v612 = vrot.slane %v551, %v611
    %v614 = vunpack.c.l.s4 1966171168
    %v615 = vunpack.c.0.s8 %v614
    %v616 = vlaneseq
    %v617 = vshrl.u32 %v616, 7
    %v618 = vsub.s32 %v615, %v617
    %v619 = vrot.slane %v605, %v618
    %v620 = vcombine.high %v612, %v612
    %v621 = vcombine.high %v619, %v619
    %v623 = vunpack.c.l.s4 1966171168
    %v624 = vunpack.c.0.s8 %v623
    %v625 = vlaneseq
    %v626 = vshrl.u32 %v625, 7
    %v627 = vsub.s32 %v624, %v626
    %v628 = vrot.slane %v612, %v627
    %v630 = vunpack.c.l.s4 1966171168
    %v631 = vunpack.c.0.s8 %v630
    %v632 = vlaneseq
    %v633 = vshrl.u32 %v632, 7
    %v634 = vsub.s32 %v631, %v633
    %v635 = vrot.slane %v619, %v634
    %v637 = vunpack.c.l.s4 1966171168
    %v638 = vunpack.c.0.s8 %v637
    %v639 = vlaneseq
    %v640 = vshrl.u32 %v639, 7
    %v641 = vsub.s32 %v638, %v640
    %v642 = vrot.slane %v620, %v641
    %v644 = vunpack.c.l.s4 1966171168
    %v645 = vunpack.c.0.s8 %v644
    %v646 = vlaneseq
    %v647 = vshrl.u32 %v646, 7
    %v648 = vsub.s32 %v645, %v647
    %v649 = vrot.slane %v621, %v648
    %v650 = vcombine.high %v628, %v628
    %v651 = vcombine.high %v635, %v635
    %v652 = vcombine.high %v642, %v642
    %v653 = vcombine.high %v649, %v649
    %v654 = vlaneseq
    %v655 = vshrl.u32 %v654, 7
    %v656 = vsub.s32 0, %v655
    %v657 = vrot.slane %v579, %v656
    %v658 = vlaneseq
    %v659 = vshrl.u32 %v658, 7
    %v660 = vsub.s32 0, %v659
    %v661 = vrot.slane %v593, %v660
    %v662 = vlaneseq
    %v663 = vshrl.u32 %v662, 7
    %v664 = vsub.s32 0, %v663
    %v665 = vrot.slane %v601, %v664
    %v666 = vlaneseq
    %v667 = vshrl.u32 %v666, 7
    %v668 = vsub.s32 0, %v667
    %v669 = vrot.slane %v603, %v668
    %v670 = vlaneseq
    %v671 = vshrl.u32 %v670, 7
    %v672 = vsub.s32 0, %v671
    %v673 = vrot.slane %v586, %v672
    %v674 = vlaneseq
    %v675 = vshrl.u32 %v674, 7
    %v676 = vsub.s32 0, %v675
    %v677 = vrot.slane %v600, %v676
    %v678 = vlaneseq
    %v679 = vshrl.u32 %v678, 7
    %v680 = vsub.s32 0, %v679
    %v681 = vrot.slane %v602, %v680
    %v682 = vlaneseq
    %v683 = vshrl.u32 %v682, 7
    %v684 = vsub.s32 0, %v683
    %v685 = vrot.slane %v604, %v684
    %v686 = vlaneseq
    %v687 = vshrl.u32 %v686, 7
    %v688 = vsub.s32 0, %v687
    %v689 = vrot.slane %v628, %v688
    %v690 = vlaneseq
    %v691 = vshrl.u32 %v690, 7
    %v692 = vsub.s32 0, %v691
    %v693 = vrot.slane %v642, %v692
    %v694 = vlaneseq
    %v695 = vshrl.u32 %v694, 7
    %v696 = vsub.s32 0, %v695
    %v697 = vrot.slane %v650, %v696
    %v698 = vlaneseq
    %v699 = vshrl.u32 %v698, 7
    %v700 = vsub.s32 0, %v699
    %v701 = vrot.slane %v652, %v700
    %v702 = vlaneseq
    %v703 = vshrl.u32 %v702, 7
    %v704 = vsub.s32 0, %v703
    %v705 = vrot.slane %v635, %v704
    %v706 = vlaneseq
    %v707 = vshrl.u32 %v706, 7
    %v708 = vsub.s32 0, %v707
    %v709 = vrot.slane %v649, %v708
    %v710 = vlaneseq
    %v711 = vshrl.u32 %v710, 7
    %v712 = vsub.s32 0, %v711
    %v713 = vrot.slane %v651, %v712
    %v714 = vlaneseq
    %v715 = vshrl.u32 %v714, 7
    %v716 = vsub.s32 0, %v715
    %v717 = vrot.slane %v653, %v716
    %v734 = vadd.f32 %v409, %v657
    %v735 = vadd.f32 %v412, %v661
    %v736 = vadd.f32 %v417, %v665
    %v737 = vadd.f32 %v420, %v669
    %v738 = vadd.f32 %v425, %v673
    %v739 = vadd.f32 %v428, %v677
    %v740 = vadd.f32 %v433, %v681
    %v741 = vadd.f32 %v436, %v685
    %v742 = vadd.f32 %v441, %v689
    %v743 = vadd.f32 %v444, %v693
    %v744 = vadd.f32 %v449, %v697
    %v745 = vadd.f32 %v452, %v701
    %v746 = vadd.f32 %v457, %v705
    %v747 = vadd.f32 %v460, %v709
    %v748 = vadd.f32 %v465, %v713
    %v749 = vadd.f32 %v468, %v717
    %v750 = vtanh.pop %v734
    %v751 = vtanh.pop %v735
    %v752 = vtanh.pop %v736
    %v753 = vtanh.pop %v737
    %v754 = vtanh.pop %v738
    %v755 = vtanh.pop %v739
    %v756 = vtanh.pop %v740
    %v757 = vtanh.pop %v741
    %v758 = vtanh.pop %v742
    %v759 = vtanh.pop %v743
    %v760 = vtanh.pop %v744
    %v761 = vtanh.pop %v745
    %v762 = vtanh.pop %v746
    %v763 = vtanh.pop %v747
    %v764 = vtanh.pop %v748
    %v765 = vtanh.pop %v749
    %v766 = vld [vmem:[%s7] sm:$0x1]
    %v768 = vlaneseq
    %v769 = vshrl.u32 %v768, 7
    %v770 = vsub.s32 0, %v769
    %v771 = vrot.slane %v766, %v770
    %v773 = vmul.f32 %v750, %v771
    %v774 = vmul.f32 %v751, %v771
    %v775 = vmul.f32 %v752, %v771
    %v776 = vmul.f32 %v753, %v771
    %v777 = vmul.f32 %v754, %v771
    %v778 = vmul.f32 %v755, %v771
    %v779 = vmul.f32 %v756, %v771
    %v780 = vmul.f32 %v757, %v771
    %v781 = vmul.f32 %v758, %v771
    %v782 = vmul.f32 %v759, %v771
    %v783 = vmul.f32 %v760, %v771
    %v784 = vmul.f32 %v761, %v771
    %v785 = vmul.f32 %v762, %v771
    %v786 = vmul.f32 %v763, %v771
    %v787 = vmul.f32 %v764, %v771
    %v788 = vmul.f32 %v765, %v771
    %v789 = vsel %vm275, %v773, 0.0
    %790 = vadd.xlane.f32.xlu0 %v789
    %v791 = vpop.xlane.xlu0 %790
    %v792 = vsel %vm275, %v774, 0.0
    %793 = vadd.xlane.f32.xlu0 %v792
    %v794 = vpop.xlane.xlu0 %793
    %v795 = vsel %vm275, %v775, 0.0
    %796 = vadd.xlane.f32.xlu0 %v795
    %v797 = vpop.xlane.xlu0 %796
    %v798 = vsel %vm275, %v776, 0.0
    %799 = vadd.xlane.f32.xlu0 %v798
    %v800 = vpop.xlane.xlu0 %799
    %v801 = vsel %vm275, %v777, 0.0
    %802 = vadd.xlane.f32.xlu0 %v801
    %v803 = vpop.xlane.xlu0 %802
    %v804 = vsel %vm275, %v778, 0.0
    %805 = vadd.xlane.f32.xlu0 %v804
    %v806 = vpop.xlane.xlu0 %805
    %v807 = vsel %vm275, %v779, 0.0
    %808 = vadd.xlane.f32.xlu0 %v807
    %v809 = vpop.xlane.xlu0 %808
    %v810 = vsel %vm275, %v780, 0.0
    %811 = vadd.xlane.f32.xlu0 %v810
    %v812 = vpop.xlane.xlu0 %811
    %v813 = vsel %vm275, %v781, 0.0
    %814 = vadd.xlane.f32.xlu0 %v813
    %v815 = vpop.xlane.xlu0 %814
    %v816 = vsel %vm275, %v782, 0.0
    %817 = vadd.xlane.f32.xlu0 %v816
    %v818 = vpop.xlane.xlu0 %817
    %v819 = vsel %vm275, %v783, 0.0
    %820 = vadd.xlane.f32.xlu0 %v819
    %v821 = vpop.xlane.xlu0 %820
    %v822 = vsel %vm275, %v784, 0.0
    %823 = vadd.xlane.f32.xlu0 %v822
    %v824 = vpop.xlane.xlu0 %823
    %v825 = vsel %vm275, %v785, 0.0
    %826 = vadd.xlane.f32.xlu0 %v825
    %v827 = vpop.xlane.xlu0 %826
    %v828 = vsel %vm275, %v786, 0.0
    %829 = vadd.xlane.f32.xlu0 %v828
    %v830 = vpop.xlane.xlu0 %829
    %v831 = vsel %vm275, %v787, 0.0
    %832 = vadd.xlane.f32.xlu0 %v831
    %v833 = vpop.xlane.xlu0 %832
    %v834 = vsel %vm275, %v788, 0.0
    %835 = vadd.xlane.f32.xlu0 %v834
    %v836 = vpop.xlane.xlu0 %835
    %v853 = vlaneseq
    %v854 = vand.u32 %v853, 127
    %v855 = vlaneseq
    %v856 = vshrl.u32 %v855, 7
    %v857 = vsub.s32 %v854, %v856
    %v858 = vrot.slane %v791, %v857
    %v859 = vlaneseq
    %v860 = vshrl.u32 %v859, 7
    %v861 = vsub.s32 %v854, %v860
    %v862 = vrot.slane %v794, %v861
    %v863 = vlaneseq
    %v864 = vshrl.u32 %v863, 7
    %v865 = vsub.s32 %v854, %v864
    %v866 = vrot.slane %v797, %v865
    %v867 = vlaneseq
    %v868 = vshrl.u32 %v867, 7
    %v869 = vsub.s32 %v854, %v868
    %v870 = vrot.slane %v800, %v869
    %v871 = vlaneseq
    %v872 = vshrl.u32 %v871, 7
    %v873 = vsub.s32 %v854, %v872
    %v874 = vrot.slane %v803, %v873
    %v875 = vlaneseq
    %v876 = vshrl.u32 %v875, 7
    %v877 = vsub.s32 %v854, %v876
    %v878 = vrot.slane %v806, %v877
    %v879 = vlaneseq
    %v880 = vshrl.u32 %v879, 7
    %v881 = vsub.s32 %v854, %v880
    %v882 = vrot.slane %v809, %v881
    %v883 = vlaneseq
    %v884 = vshrl.u32 %v883, 7
    %v885 = vsub.s32 %v854, %v884
    %v886 = vrot.slane %v812, %v885
    %v887 = vlaneseq
    %v888 = vshrl.u32 %v887, 7
    %v889 = vsub.s32 %v854, %v888
    %v890 = vrot.slane %v815, %v889
    %v891 = vlaneseq
    %v892 = vshrl.u32 %v891, 7
    %v893 = vsub.s32 %v854, %v892
    %v894 = vrot.slane %v818, %v893
    %v895 = vlaneseq
    %v896 = vshrl.u32 %v895, 7
    %v897 = vsub.s32 %v854, %v896
    %v898 = vrot.slane %v821, %v897
    %v899 = vlaneseq
    %v900 = vshrl.u32 %v899, 7
    %v901 = vsub.s32 %v854, %v900
    %v902 = vrot.slane %v824, %v901
    %v903 = vlaneseq
    %v904 = vshrl.u32 %v903, 7
    %v905 = vsub.s32 %v854, %v904
    %v906 = vrot.slane %v827, %v905
    %v907 = vlaneseq
    %v908 = vshrl.u32 %v907, 7
    %v909 = vsub.s32 %v854, %v908
    %v910 = vrot.slane %v830, %v909
    %v911 = vlaneseq
    %v912 = vshrl.u32 %v911, 7
    %v913 = vsub.s32 %v854, %v912
    %v914 = vrot.slane %v833, %v913
    %v915 = vlaneseq
    %v916 = vshrl.u32 %v915, 7
    %v917 = vsub.s32 %v854, %v916
    %v918 = vrot.slane %v836, %v917
    %vm919 = vcmask 1041409
    %v920 = vsel %vm919, %v862, %v858
    %vm921 = vcmask 1042434
    %v922 = vsel %vm921, %v866, %v920
    %vm923 = vcmask 1043459
    %v924 = vsel %vm923, %v870, %v922
    %vm925 = vcmask 1044484
    %v926 = vsel %vm925, %v874, %v924
    %vm927 = vcmask 1045509
    %v928 = vsel %vm927, %v878, %v926
    %vm929 = vcmask 1046534
    %v930 = vsel %vm929, %v882, %v928
    %vm931 = vcmask 1047559
    %v932 = vsel %vm931, %v886, %v930
    %v933 = vsel %vm919, %v894, %v890
    %v934 = vsel %vm921, %v898, %v933
    %v935 = vsel %vm923, %v902, %v934
    %v936 = vsel %vm925, %v906, %v935
    %v937 = vsel %vm927, %v910, %v936
    %v938 = vsel %vm929, %v914, %v937
    %v939 = vsel %vm931, %v918, %v938
    %vm942 = vcmask 64512
    %v943 = vsel %vm942, %v932, -inf
    %944 = vmax.xlane.f32.xlu0 %v943
    %v945 = vpop.xlane.xlu0 %944
    %v946 = vsel %vm942, %v939, -inf
    %947 = vmax.xlane.f32.xlu0 %v946
    %v948 = vpop.xlane.xlu0 %947
    %v951 = vlaneseq
    %v952 = vshrl.u32 %v951, 7
    %v953 = vsub.s32 0, %v952
    %v954 = vrot.slane %v945, %v953
    %v955 = vlaneseq
    %v956 = vshrl.u32 %v955, 7
    %v957 = vsub.s32 1, %v956
    %v958 = vrot.slane %v945, %v957
    %v959 = vlaneseq
    %v960 = vshrl.u32 %v959, 7
    %v961 = vsub.s32 2, %v960
    %v962 = vrot.slane %v945, %v961
    %v963 = vlaneseq
    %v964 = vshrl.u32 %v963, 7
    %v965 = vsub.s32 3, %v964
    %v966 = vrot.slane %v945, %v965
    %v967 = vlaneseq
    %v968 = vshrl.u32 %v967, 7
    %v969 = vsub.s32 4, %v968
    %v970 = vrot.slane %v945, %v969
    %v971 = vlaneseq
    %v972 = vshrl.u32 %v971, 7
    %v973 = vsub.s32 5, %v972
    %v974 = vrot.slane %v945, %v973
    %v975 = vlaneseq
    %v976 = vshrl.u32 %v975, 7
    %v977 = vsub.s32 6, %v976
    %v978 = vrot.slane %v945, %v977
    %v979 = vlaneseq
    %v980 = vshrl.u32 %v979, 7
    %v981 = vsub.s32 7, %v980
    %v982 = vrot.slane %v945, %v981
    %v983 = vlaneseq
    %v984 = vshrl.u32 %v983, 7
    %v985 = vsub.s32 0, %v984
    %v986 = vrot.slane %v948, %v985
    %v987 = vlaneseq
    %v988 = vshrl.u32 %v987, 7
    %v989 = vsub.s32 1, %v988
    %v990 = vrot.slane %v948, %v989
    %v991 = vlaneseq
    %v992 = vshrl.u32 %v991, 7
    %v993 = vsub.s32 2, %v992
    %v994 = vrot.slane %v948, %v993
    %v995 = vlaneseq
    %v996 = vshrl.u32 %v995, 7
    %v997 = vsub.s32 3, %v996
    %v998 = vrot.slane %v948, %v997
    %v999 = vlaneseq
    %v1000 = vshrl.u32 %v999, 7
    %v1001 = vsub.s32 4, %v1000
    %v1002 = vrot.slane %v948, %v1001
    %v1003 = vlaneseq
    %v1004 = vshrl.u32 %v1003, 7
    %v1005 = vsub.s32 5, %v1004
    %v1006 = vrot.slane %v948, %v1005
    %v1007 = vlaneseq
    %v1008 = vshrl.u32 %v1007, 7
    %v1009 = vsub.s32 6, %v1008
    %v1010 = vrot.slane %v948, %v1009
    %v1011 = vlaneseq
    %v1012 = vshrl.u32 %v1011, 7
    %v1013 = vsub.s32 7, %v1012
    %v1014 = vrot.slane %v948, %v1013
    %v1031 = vsub.f32 %v791, %v954
    %v1032 = vsub.f32 %v794, %v958
    %v1033 = vsub.f32 %v797, %v962
    %v1034 = vsub.f32 %v800, %v966
    %v1035 = vsub.f32 %v803, %v970
    %v1036 = vsub.f32 %v806, %v974
    %v1037 = vsub.f32 %v809, %v978
    %v1038 = vsub.f32 %v812, %v982
    %v1039 = vsub.f32 %v815, %v986
    %v1040 = vsub.f32 %v818, %v990
    %v1041 = vsub.f32 %v821, %v994
    %v1042 = vsub.f32 %v824, %v998
    %v1043 = vsub.f32 %v827, %v1002
    %v1044 = vsub.f32 %v830, %v1006
    %v1045 = vsub.f32 %v833, %v1010
    %v1046 = vsub.f32 %v836, %v1014
    %v1047 = vmul.f32 %v1031, 1.442695
    %v1048 = vpow.pop %v1047
    %v1049 = vmul.f32 %v1032, 1.442695
    %v1050 = vpow.pop %v1049
    %v1051 = vmul.f32 %v1033, 1.442695
    %v1052 = vpow.pop %v1051
    %v1053 = vmul.f32 %v1034, 1.442695
    %v1054 = vpow.pop %v1053
    %v1055 = vmul.f32 %v1035, 1.442695
    %v1056 = vpow.pop %v1055
    %v1057 = vmul.f32 %v1036, 1.442695
    %v1058 = vpow.pop %v1057
    %v1059 = vmul.f32 %v1037, 1.442695
    %v1060 = vpow.pop %v1059
    %v1061 = vmul.f32 %v1038, 1.442695
    %v1062 = vpow.pop %v1061
    %v1063 = vmul.f32 %v1039, 1.442695
    %v1064 = vpow.pop %v1063
    %v1065 = vmul.f32 %v1040, 1.442695
    %v1066 = vpow.pop %v1065
    %v1067 = vmul.f32 %v1041, 1.442695
    %v1068 = vpow.pop %v1067
    %v1069 = vmul.f32 %v1042, 1.442695
    %v1070 = vpow.pop %v1069
    %v1071 = vmul.f32 %v1043, 1.442695
    %v1072 = vpow.pop %v1071
    %v1073 = vmul.f32 %v1044, 1.442695
    %v1074 = vpow.pop %v1073
    %v1075 = vmul.f32 %v1045, 1.442695
    %v1076 = vpow.pop %v1075
    %v1077 = vmul.f32 %v1046, 1.442695
    %v1078 = vpow.pop %v1077
    %1095 = vset.pattern.permute.xlu0 0
    %1096 = vperm.xlu0 %1095, %v1048
    %v1097 = vpop.permute.xlu0 %1096
    %1098 = vset.pattern.permute.xlu0 0
    %1099 = vperm.xlu0 %1098, %v1050
    %v1100 = vpop.permute.xlu0 %1099
    %1101 = vset.pattern.permute.xlu0 0
    %1102 = vperm.xlu0 %1101, %v1052
    %v1103 = vpop.permute.xlu0 %1102
    %1104 = vset.pattern.permute.xlu0 0
    %1105 = vperm.xlu0 %1104, %v1054
    %v1106 = vpop.permute.xlu0 %1105
    %1107 = vset.pattern.permute.xlu0 0
    %1108 = vperm.xlu0 %1107, %v1056
    %v1109 = vpop.permute.xlu0 %1108
    %1110 = vset.pattern.permute.xlu0 0
    %1111 = vperm.xlu0 %1110, %v1058
    %v1112 = vpop.permute.xlu0 %1111
    %1113 = vset.pattern.permute.xlu0 0
    %1114 = vperm.xlu0 %1113, %v1060
    %v1115 = vpop.permute.xlu0 %1114
    %1116 = vset.pattern.permute.xlu0 0
    %1117 = vperm.xlu0 %1116, %v1062
    %v1118 = vpop.permute.xlu0 %1117
    %1119 = vset.pattern.permute.xlu0 0
    %1120 = vperm.xlu0 %1119, %v1064
    %v1121 = vpop.permute.xlu0 %1120
    %1122 = vset.pattern.permute.xlu0 0
    %1123 = vperm.xlu0 %1122, %v1066
    %v1124 = vpop.permute.xlu0 %1123
    %1125 = vset.pattern.permute.xlu0 0
    %1126 = vperm.xlu0 %1125, %v1068
    %v1127 = vpop.permute.xlu0 %1126
    %1128 = vset.pattern.permute.xlu0 0
    %1129 = vperm.xlu0 %1128, %v1070
    %v1130 = vpop.permute.xlu0 %1129
    %1131 = vset.pattern.permute.xlu0 0
    %1132 = vperm.xlu0 %1131, %v1072
    %v1133 = vpop.permute.xlu0 %1132
    %1134 = vset.pattern.permute.xlu0 0
    %1135 = vperm.xlu0 %1134, %v1074
    %v1136 = vpop.permute.xlu0 %1135
    %1137 = vset.pattern.permute.xlu0 0
    %1138 = vperm.xlu0 %1137, %v1076
    %v1139 = vpop.permute.xlu0 %1138
    %1140 = vset.pattern.permute.xlu0 0
    %1141 = vperm.xlu0 %1140, %v1078
    %v1142 = vpop.permute.xlu0 %1141
    %v1143 = vlaneseq
    %v1144 = vshrl.u32 %v1143, 7
    %v1145 = vsub.s32 %v854, %v1144
    %v1146 = vrot.slane %v1097, %v1145
    %v1147 = vlaneseq
    %v1148 = vshrl.u32 %v1147, 7
    %v1149 = vsub.s32 %v854, %v1148
    %v1150 = vrot.slane %v1100, %v1149
    %v1151 = vlaneseq
    %v1152 = vshrl.u32 %v1151, 7
    %v1153 = vsub.s32 %v854, %v1152
    %v1154 = vrot.slane %v1103, %v1153
    %v1155 = vlaneseq
    %v1156 = vshrl.u32 %v1155, 7
    %v1157 = vsub.s32 %v854, %v1156
    %v1158 = vrot.slane %v1106, %v1157
    %v1159 = vlaneseq
    %v1160 = vshrl.u32 %v1159, 7
    %v1161 = vsub.s32 %v854, %v1160
    %v1162 = vrot.slane %v1109, %v1161
    %v1163 = vlaneseq
    %v1164 = vshrl.u32 %v1163, 7
    %v1165 = vsub.s32 %v854, %v1164
    %v1166 = vrot.slane %v1112, %v1165
    %v1167 = vlaneseq
    %v1168 = vshrl.u32 %v1167, 7
    %v1169 = vsub.s32 %v854, %v1168
    %v1170 = vrot.slane %v1115, %v1169
    %v1171 = vlaneseq
    %v1172 = vshrl.u32 %v1171, 7
    %v1173 = vsub.s32 %v854, %v1172
    %v1174 = vrot.slane %v1118, %v1173
    %v1175 = vlaneseq
    %v1176 = vshrl.u32 %v1175, 7
    %v1177 = vsub.s32 %v854, %v1176
    %v1178 = vrot.slane %v1121, %v1177
    %v1179 = vlaneseq
    %v1180 = vshrl.u32 %v1179, 7
    %v1181 = vsub.s32 %v854, %v1180
    %v1182 = vrot.slane %v1124, %v1181
    %v1183 = vlaneseq
    %v1184 = vshrl.u32 %v1183, 7
    %v1185 = vsub.s32 %v854, %v1184
    %v1186 = vrot.slane %v1127, %v1185
    %v1187 = vlaneseq
    %v1188 = vshrl.u32 %v1187, 7
    %v1189 = vsub.s32 %v854, %v1188
    %v1190 = vrot.slane %v1130, %v1189
    %v1191 = vlaneseq
    %v1192 = vshrl.u32 %v1191, 7
    %v1193 = vsub.s32 %v854, %v1192
    %v1194 = vrot.slane %v1133, %v1193
    %v1195 = vlaneseq
    %v1196 = vshrl.u32 %v1195, 7
    %v1197 = vsub.s32 %v854, %v1196
    %v1198 = vrot.slane %v1136, %v1197
    %v1199 = vlaneseq
    %v1200 = vshrl.u32 %v1199, 7
    %v1201 = vsub.s32 %v854, %v1200
    %v1202 = vrot.slane %v1139, %v1201
    %v1203 = vlaneseq
    %v1204 = vshrl.u32 %v1203, 7
    %v1205 = vsub.s32 %v854, %v1204
    %v1206 = vrot.slane %v1142, %v1205
    %v1207 = vsel %vm919, %v1150, %v1146
    %v1208 = vsel %vm921, %v1154, %v1207
    %v1209 = vsel %vm923, %v1158, %v1208
    %v1210 = vsel %vm925, %v1162, %v1209
    %v1211 = vsel %vm927, %v1166, %v1210
    %v1212 = vsel %vm929, %v1170, %v1211
    %v1213 = vsel %vm931, %v1174, %v1212
    %v1214 = vsel %vm919, %v1182, %v1178
    %v1215 = vsel %vm921, %v1186, %v1214
    %v1216 = vsel %vm923, %v1190, %v1215
    %v1217 = vsel %vm925, %v1194, %v1216
    %v1218 = vsel %vm927, %v1198, %v1217
    %v1219 = vsel %vm929, %v1202, %v1218
    %v1220 = vsel %vm931, %v1206, %v1219
    %v1223 = vsel %vm942, %v1213, 0.0
    %1224 = vadd.xlane.f32.xlu0 %v1223
    %v1225 = vpop.xlane.xlu0 %1224
    %v1226 = vsel %vm942, %v1220, 0.0
    %1227 = vadd.xlane.f32.xlu0 %v1226
    %v1228 = vpop.xlane.xlu0 %1227
    %v1229 = vrcp.pop %v1225
    %v1230 = vrcp.pop %v1228
    %v1233 = vlaneseq
    %v1234 = vshrl.u32 %v1233, 7
    %v1235 = vsub.s32 0, %v1234
    %v1236 = vrot.slane %v1229, %v1235
    %v1237 = vlaneseq
    %v1238 = vshrl.u32 %v1237, 7
    %v1239 = vsub.s32 1, %v1238
    %v1240 = vrot.slane %v1229, %v1239
    %v1241 = vlaneseq
    %v1242 = vshrl.u32 %v1241, 7
    %v1243 = vsub.s32 2, %v1242
    %v1244 = vrot.slane %v1229, %v1243
    %v1245 = vlaneseq
    %v1246 = vshrl.u32 %v1245, 7
    %v1247 = vsub.s32 3, %v1246
    %v1248 = vrot.slane %v1229, %v1247
    %v1249 = vlaneseq
    %v1250 = vshrl.u32 %v1249, 7
    %v1251 = vsub.s32 4, %v1250
    %v1252 = vrot.slane %v1229, %v1251
    %v1253 = vlaneseq
    %v1254 = vshrl.u32 %v1253, 7
    %v1255 = vsub.s32 5, %v1254
    %v1256 = vrot.slane %v1229, %v1255
    %v1257 = vlaneseq
    %v1258 = vshrl.u32 %v1257, 7
    %v1259 = vsub.s32 6, %v1258
    %v1260 = vrot.slane %v1229, %v1259
    %v1261 = vlaneseq
    %v1262 = vshrl.u32 %v1261, 7
    %v1263 = vsub.s32 7, %v1262
    %v1264 = vrot.slane %v1229, %v1263
    %v1265 = vlaneseq
    %v1266 = vshrl.u32 %v1265, 7
    %v1267 = vsub.s32 0, %v1266
    %v1268 = vrot.slane %v1230, %v1267
    %v1269 = vlaneseq
    %v1270 = vshrl.u32 %v1269, 7
    %v1271 = vsub.s32 1, %v1270
    %v1272 = vrot.slane %v1230, %v1271
    %v1273 = vlaneseq
    %v1274 = vshrl.u32 %v1273, 7
    %v1275 = vsub.s32 2, %v1274
    %v1276 = vrot.slane %v1230, %v1275
    %v1277 = vlaneseq
    %v1278 = vshrl.u32 %v1277, 7
    %v1279 = vsub.s32 3, %v1278
    %v1280 = vrot.slane %v1230, %v1279
    %v1281 = vlaneseq
    %v1282 = vshrl.u32 %v1281, 7
    %v1283 = vsub.s32 4, %v1282
    %v1284 = vrot.slane %v1230, %v1283
    %v1285 = vlaneseq
    %v1286 = vshrl.u32 %v1285, 7
    %v1287 = vsub.s32 5, %v1286
    %v1288 = vrot.slane %v1230, %v1287
    %v1289 = vlaneseq
    %v1290 = vshrl.u32 %v1289, 7
    %v1291 = vsub.s32 6, %v1290
    %v1292 = vrot.slane %v1230, %v1291
    %v1293 = vlaneseq
    %v1294 = vshrl.u32 %v1293, 7
    %v1295 = vsub.s32 7, %v1294
    %v1296 = vrot.slane %v1230, %v1295
    %v1313 = vmul.f32 %v1048, %v1236
    %v1314 = vmul.f32 %v1050, %v1240
    %v1315 = vmul.f32 %v1052, %v1244
    %v1316 = vmul.f32 %v1054, %v1248
    %v1317 = vmul.f32 %v1056, %v1252
    %v1318 = vmul.f32 %v1058, %v1256
    %v1319 = vmul.f32 %v1060, %v1260
    %v1320 = vmul.f32 %v1062, %v1264
    %v1321 = vmul.f32 %v1064, %v1268
    %v1322 = vmul.f32 %v1066, %v1272
    %v1323 = vmul.f32 %v1068, %v1276
    %v1324 = vmul.f32 %v1070, %v1280
    %v1325 = vmul.f32 %v1072, %v1284
    %v1326 = vmul.f32 %v1074, %v1288
    %v1327 = vmul.f32 %v1076, %v1292
    %v1328 = vmul.f32 %v1078, %v1296
    %v1329 = vunpack.c.l.bf16 %v278
    %v1330 = vunpack.c.l.bf16 %v279
    %v1331 = vunpack.c.l.bf16 %v280
    %v1332 = vunpack.c.l.bf16 %v281
    %v1333 = vunpack.c.l.bf16 %v282
    %v1334 = vunpack.c.l.bf16 %v283
    %v1335 = vunpack.c.l.bf16 %v284
    %v1336 = vunpack.c.l.bf16 %v285
    %v1337 = vunpack.c.l.bf16 %v286
    %v1338 = vunpack.c.l.bf16 %v287
    %v1339 = vunpack.c.l.bf16 %v288
    %v1340 = vunpack.c.l.bf16 %v289
    %v1341 = vunpack.c.l.bf16 %v290
    %v1342 = vunpack.c.l.bf16 %v291
    %v1343 = vunpack.c.l.bf16 %v292
    %v1344 = vunpack.c.l.bf16 %v293
    %1346 = vset.pattern.permute.xlu0 0
    %1347 = vperm.xlu0 %1346, %v1313
    %v1348 = vpop.permute.xlu0 %1347
    %1351 = vset.pattern.permute.xlu0 0
    %1352 = vperm.xlu0 %1351, %v1314
    %v1353 = vpop.permute.xlu0 %1352
    %1356 = vset.pattern.permute.xlu0 0
    %1357 = vperm.xlu0 %1356, %v1315
    %v1358 = vpop.permute.xlu0 %1357
    %1361 = vset.pattern.permute.xlu0 0
    %1362 = vperm.xlu0 %1361, %v1316
    %v1363 = vpop.permute.xlu0 %1362
    %1366 = vset.pattern.permute.xlu0 0
    %1367 = vperm.xlu0 %1366, %v1317
    %v1368 = vpop.permute.xlu0 %1367
    %1371 = vset.pattern.permute.xlu0 0
    %1372 = vperm.xlu0 %1371, %v1318
    %v1373 = vpop.permute.xlu0 %1372
    %1376 = vset.pattern.permute.xlu0 0
    %1377 = vperm.xlu0 %1376, %v1319
    %v1378 = vpop.permute.xlu0 %1377
    %1381 = vset.pattern.permute.xlu0 0
    %1382 = vperm.xlu0 %1381, %v1320
    %v1383 = vpop.permute.xlu0 %1382
    %1386 = vset.pattern.permute.xlu0 0
    %1387 = vperm.xlu0 %1386, %v1321
    %v1388 = vpop.permute.xlu0 %1387
    %1391 = vset.pattern.permute.xlu0 0
    %1392 = vperm.xlu0 %1391, %v1322
    %v1393 = vpop.permute.xlu0 %1392
    %1396 = vset.pattern.permute.xlu0 0
    %1397 = vperm.xlu0 %1396, %v1323
    %v1398 = vpop.permute.xlu0 %1397
    %1401 = vset.pattern.permute.xlu0 0
    %1402 = vperm.xlu0 %1401, %v1324
    %v1403 = vpop.permute.xlu0 %1402
    %1406 = vset.pattern.permute.xlu0 0
    %1407 = vperm.xlu0 %1406, %v1325
    %v1408 = vpop.permute.xlu0 %1407
    %1411 = vset.pattern.permute.xlu0 0
    %1412 = vperm.xlu0 %1411, %v1326
    %v1413 = vpop.permute.xlu0 %1412
    %1416 = vset.pattern.permute.xlu0 0
    %1417 = vperm.xlu0 %1416, %v1327
    %v1418 = vpop.permute.xlu0 %1417
    %1421 = vset.pattern.permute.xlu0 0
    %1422 = vperm.xlu0 %1421, %v1328
    %v1423 = vpop.permute.xlu0 %1422
    %v1425 = vmul.f32 %v1348, %v1329
    %v1426 = vmul.f32 %v1353, %v1330
    %v1427 = vmul.f32 %v1358, %v1331
    %v1428 = vmul.f32 %v1363, %v1332
    %v1429 = vmul.f32 %v1368, %v1333
    %v1430 = vmul.f32 %v1373, %v1334
    %v1431 = vmul.f32 %v1378, %v1335
    %v1432 = vmul.f32 %v1383, %v1336
    %v1433 = vmul.f32 %v1388, %v1337
    %v1434 = vmul.f32 %v1393, %v1338
    %v1435 = vmul.f32 %v1398, %v1339
    %v1436 = vmul.f32 %v1403, %v1340
    %v1437 = vmul.f32 %v1408, %v1341
    %v1438 = vmul.f32 %v1413, %v1342
    %v1439 = vmul.f32 %v1418, %v1343
    %v1440 = vmul.f32 %v1423, %v1344
    %v1441 = vsel %vm275, %v1425, 0.0
    %v1442 = vrot.slane %v1441, 4
    %v1443 = vadd.f32 %v1441, %v1442
    %v1444 = vrot.slane %v1443, 2
    %v1445 = vadd.f32 %v1443, %v1444
    %v1446 = vrot.slane %v1445, 1
    %v1447 = vadd.f32 %v1445, %v1446
    %v1448 = vsel %vm275, %v1426, 0.0
    %v1449 = vrot.slane %v1448, 4
    %v1450 = vadd.f32 %v1448, %v1449
    %v1451 = vrot.slane %v1450, 2
    %v1452 = vadd.f32 %v1450, %v1451
    %v1453 = vrot.slane %v1452, 1
    %v1454 = vadd.f32 %v1452, %v1453
    %v1455 = vsel %vm275, %v1427, 0.0
    %v1456 = vrot.slane %v1455, 4
    %v1457 = vadd.f32 %v1455, %v1456
    %v1458 = vrot.slane %v1457, 2
    %v1459 = vadd.f32 %v1457, %v1458
    %v1460 = vrot.slane %v1459, 1
    %v1461 = vadd.f32 %v1459, %v1460
    %v1462 = vsel %vm275, %v1428, 0.0
    %v1463 = vrot.slane %v1462, 4
    %v1464 = vadd.f32 %v1462, %v1463
    %v1465 = vrot.slane %v1464, 2
    %v1466 = vadd.f32 %v1464, %v1465
    %v1467 = vrot.slane %v1466, 1
    %v1468 = vadd.f32 %v1466, %v1467
    %v1469 = vsel %vm275, %v1429, 0.0
    %v1470 = vrot.slane %v1469, 4
    %v1471 = vadd.f32 %v1469, %v1470
    %v1472 = vrot.slane %v1471, 2
    %v1473 = vadd.f32 %v1471, %v1472
    %v1474 = vrot.slane %v1473, 1
    %v1475 = vadd.f32 %v1473, %v1474
    %v1476 = vsel %vm275, %v1430, 0.0
    %v1477 = vrot.slane %v1476, 4
    %v1478 = vadd.f32 %v1476, %v1477
    %v1479 = vrot.slane %v1478, 2
    %v1480 = vadd.f32 %v1478, %v1479
    %v1481 = vrot.slane %v1480, 1
    %v1482 = vadd.f32 %v1480, %v1481
    %v1483 = vsel %vm275, %v1431, 0.0
    %v1484 = vrot.slane %v1483, 4
    %v1485 = vadd.f32 %v1483, %v1484
    %v1486 = vrot.slane %v1485, 2
    %v1487 = vadd.f32 %v1485, %v1486
    %v1488 = vrot.slane %v1487, 1
    %v1489 = vadd.f32 %v1487, %v1488
    %v1490 = vsel %vm275, %v1432, 0.0
    %v1491 = vrot.slane %v1490, 4
    %v1492 = vadd.f32 %v1490, %v1491
    %v1493 = vrot.slane %v1492, 2
    %v1494 = vadd.f32 %v1492, %v1493
    %v1495 = vrot.slane %v1494, 1
    %v1496 = vadd.f32 %v1494, %v1495
    %v1497 = vsel %vm275, %v1433, 0.0
    %v1498 = vrot.slane %v1497, 4
    %v1499 = vadd.f32 %v1497, %v1498
    %v1500 = vrot.slane %v1499, 2
    %v1501 = vadd.f32 %v1499, %v1500
    %v1502 = vrot.slane %v1501, 1
    %v1503 = vadd.f32 %v1501, %v1502
    %v1504 = vsel %vm275, %v1434, 0.0
    %v1505 = vrot.slane %v1504, 4
    %v1506 = vadd.f32 %v1504, %v1505
    %v1507 = vrot.slane %v1506, 2
    %v1508 = vadd.f32 %v1506, %v1507
    %v1509 = vrot.slane %v1508, 1
    %v1510 = vadd.f32 %v1508, %v1509
    %v1511 = vsel %vm275, %v1435, 0.0
    %v1512 = vrot.slane %v1511, 4
    %v1513 = vadd.f32 %v1511, %v1512
    %v1514 = vrot.slane %v1513, 2
    %v1515 = vadd.f32 %v1513, %v1514
    %v1516 = vrot.slane %v1515, 1
    %v1517 = vadd.f32 %v1515, %v1516
    %v1518 = vsel %vm275, %v1436, 0.0
    %v1519 = vrot.slane %v1518, 4
    %v1520 = vadd.f32 %v1518, %v1519
    %v1521 = vrot.slane %v1520, 2
    %v1522 = vadd.f32 %v1520, %v1521
    %v1523 = vrot.slane %v1522, 1
    %v1524 = vadd.f32 %v1522, %v1523
    %v1525 = vsel %vm275, %v1437, 0.0
    %v1526 = vrot.slane %v1525, 4
    %v1527 = vadd.f32 %v1525, %v1526
    %v1528 = vrot.slane %v1527, 2
    %v1529 = vadd.f32 %v1527, %v1528
    %v1530 = vrot.slane %v1529, 1
    %v1531 = vadd.f32 %v1529, %v1530
    %v1532 = vsel %vm275, %v1438, 0.0
    %v1533 = vrot.slane %v1532, 4
    %v1534 = vadd.f32 %v1532, %v1533
    %v1535 = vrot.slane %v1534, 2
    %v1536 = vadd.f32 %v1534, %v1535
    %v1537 = vrot.slane %v1536, 1
    %v1538 = vadd.f32 %v1536, %v1537
    %v1539 = vsel %vm275, %v1439, 0.0
    %v1540 = vrot.slane %v1539, 4
    %v1541 = vadd.f32 %v1539, %v1540
    %v1542 = vrot.slane %v1541, 2
    %v1543 = vadd.f32 %v1541, %v1542
    %v1544 = vrot.slane %v1543, 1
    %v1545 = vadd.f32 %v1543, %v1544
    %v1546 = vsel %vm275, %v1440, 0.0
    %v1547 = vrot.slane %v1546, 4
    %v1548 = vadd.f32 %v1546, %v1547
    %v1549 = vrot.slane %v1548, 2
    %v1550 = vadd.f32 %v1548, %v1549
    %v1551 = vrot.slane %v1550, 1
    %v1552 = vadd.f32 %v1550, %v1551
    %v1553 = vld [vmem:[#allocation11] sm:$0xff]
    %v1554 = vld [vmem:[#allocation11 + $0x8] sm:$0xff]
    %v1555 = vld [vmem:[#allocation11 + $0x10] sm:$0xff]
    %v1556 = vld [vmem:[#allocation11 + $0x18] sm:$0xff]
    %v1573 = vsel %vm919, %v1454, %v1447
    %v1574 = vsel %vm921, %v1461, %v1573
    %v1575 = vsel %vm923, %v1468, %v1574
    %v1576 = vsel %vm925, %v1475, %v1575
    %v1577 = vsel %vm927, %v1482, %v1576
    %v1578 = vsel %vm929, %v1489, %v1577
    %v1579 = vsel %vm931, %v1496, %v1578
    %v1580 = vsel %vm919, %v1510, %v1503
    %v1581 = vsel %vm921, %v1517, %v1580
    %v1582 = vsel %vm923, %v1524, %v1581
    %v1583 = vsel %vm925, %v1531, %v1582
    %v1584 = vsel %vm927, %v1538, %v1583
    %v1585 = vsel %vm929, %v1545, %v1584
    %v1586 = vsel %vm931, %v1552, %v1585
    %v1587 = vsel %vm275, %v1579, 0
    %v1589 = vsel %vm275, %v1586, 0
    %1591 = vmatprep.subr.mxu0 0.0
    %1592 = vmatpush1.msra.mxu0 %v1553
    %1593 = vmatprep.subr.mxu0 0.0
    %1594 = vmatpush1.msra.mxu0 %v1554
    %1595 = vmatprep.subr.mxu0 0.0
    %1596 = vmatpush1.msra.mxu0 %v1555
    %1597 = vmatprep.subr.mxu0 0.0
    %1598 = vmatpush1.msra.mxu0 %v1556
    %1599 = vmatprep.subr.mxu0 0.0
    %1600 = vmatpush1.msra.mxu0 0.0
    %1601 = vmatprep.subr.mxu0 0.0
    %1602 = vmatpush1.msra.mxu0 0.0
    %1603 = vmatprep.subr.mxu0 0.0
    %1604 = vmatpush1.msra.mxu0 0.0
    %1605 = vmatprep.subr.mxu0 0.0
    %1606 = vmatpush1.msra.mxu0 0.0
    %1607 = vmatprep.subr.mxu0 0.0
    %1608 = vmatpush1.msra.mxu0 0.0
    %1609 = vmatprep.subr.mxu0 0.0
    %1610 = vmatpush1.msra.mxu0 0.0
    %1611 = vmatprep.subr.mxu0 0.0
    %1612 = vmatpush1.msra.mxu0 0.0
    %1613 = vmatprep.subr.mxu0 0.0
    %1614 = vmatpush1.msra.mxu0 0.0
    %1615 = vmatprep.subr.mxu0 0.0
    %1616 = vmatpush1.msra.mxu0 0.0
    %1617 = vmatprep.subr.mxu0 0.0
    %1618 = vmatpush1.msra.mxu0 0.0
    %1619 = vmatprep.subr.mxu0 0.0
    %1620 = vmatpush1.msra.mxu0 0.0
    %1621 = vmatprep.subr.mxu0 0.0
    %1622 = vmatpush1.msra.mxu0 0.0
    %1623 = vmatprep.subr.mxu0 0.0
    %1624 = vmatpush1.msra.mxu0 0.0
    %1625 = vmatprep.subr.mxu0 0.0
    %1626 = vmatpush1.msra.mxu0 0.0
    %1627 = vmatprep.subr.mxu0 0.0
    %1628 = vmatpush1.msra.mxu0 0.0
    %1629 = vmatprep.subr.mxu0 0.0
    %1630 = vmatpush1.msra.mxu0 0.0
    %1631 = vmatprep.subr.mxu0 0.0
    %1632 = vmatpush1.msra.mxu0 0.0
    %1633 = vmatprep.subr.mxu0 0.0
    %1634 = vmatpush1.msra.mxu0 0.0
    %1635 = vmatprep.subr.mxu0 0.0
    %1636 = vmatpush1.msra.mxu0 0.0
    %1637 = vmatprep.subr.mxu0 0.0
    %1638 = vmatpush1.msra.mxu0 0.0
    %1639 = vmatprep.subr.mxu0 0.0
    %1640 = vmatpush1.msra.mxu0 0.0
    %1641 = vmatprep.subr.mxu0 0.0
    %1642 = vmatpush1.msra.mxu0 0.0
    %1643 = vmatprep.subr.mxu0 0.0
    %1644 = vmatpush1.msra.mxu0 0.0
    %1645 = vmatprep.subr.mxu0 0.0
    %1646 = vmatpush1.msra.mxu0 0.0
    %1647 = vmatprep.subr.mxu0 0.0
    %1648 = vmatpush1.msra.mxu0 0.0
    %1649 = vmatprep.subr.mxu0 0.0
    %1650 = vmatpush1.msra.mxu0 0.0
    %1651 = vmatprep.subr.mxu0 0.0
    %1652 = vmatpush1.msra.mxu0 0.0
    %1653 = vmatprep.subr.mxu0 0.0
    %1654 = vmatpush1.msra.mxu0 0.0
    %1655 = vmatprep.mubr.f32.mxu0 0.0
    %1656 = vmatmul.mubr.f32.gmra.mrb[0].mxu0 %v1587
    %v1657 = vpop.f32.mrb[0].mxu0
    %v1658 = vadd.f32 0.0, %v1657
    %v1659 = vpop.f32.mrb[0].mxu0
    %1660 = vmatprep.mubr.f32.mxu0 0.0
    %1661 = vmatmul.mubr.f32.gmra.mrb[0].mxu0 %v1589
    %v1662 = vpop.f32.mrb[0].mxu0
    %v1663 = vadd.f32 0.0, %v1662
    %v1664 = vpop.f32.mrb[0].mxu0
    %1665 = vdwg.mxu0
    %v1668 = vcombine.high %v1658, %v1658
    %v1670 = vunpack.c.l.s4 1966171168
    %v1671 = vunpack.c.0.s8 %v1670
    %v1672 = vlaneseq
    %v1673 = vshrl.u32 %v1672, 7
    %v1674 = vsub.s32 %v1671, %v1673
    %v1675 = vrot.slane %v1658, %v1674
    %v1677 = vunpack.c.l.s4 1966171168
    %v1678 = vunpack.c.0.s8 %v1677
    %v1679 = vlaneseq
    %v1680 = vshrl.u32 %v1679, 7
    %v1681 = vsub.s32 %v1678, %v1680
    %v1682 = vrot.slane %v1668, %v1681
    %v1683 = vcombine.high %v1675, %v1675
    %v1684 = vcombine.high %v1682, %v1682
    %v1686 = vunpack.c.l.s4 1966171168
    %v1687 = vunpack.c.0.s8 %v1686
    %v1688 = vlaneseq
    %v1689 = vshrl.u32 %v1688, 7
    %v1690 = vsub.s32 %v1687, %v1689
    %v1691 = vrot.slane %v1675, %v1690
    %v1693 = vunpack.c.l.s4 1966171168
    %v1694 = vunpack.c.0.s8 %v1693
    %v1695 = vlaneseq
    %v1696 = vshrl.u32 %v1695, 7
    %v1697 = vsub.s32 %v1694, %v1696
    %v1698 = vrot.slane %v1682, %v1697
    %v1700 = vunpack.c.l.s4 1966171168
    %v1701 = vunpack.c.0.s8 %v1700
    %v1702 = vlaneseq
    %v1703 = vshrl.u32 %v1702, 7
    %v1704 = vsub.s32 %v1701, %v1703
    %v1705 = vrot.slane %v1683, %v1704
    %v1707 = vunpack.c.l.s4 1966171168
    %v1708 = vunpack.c.0.s8 %v1707
    %v1709 = vlaneseq
    %v1710 = vshrl.u32 %v1709, 7
    %v1711 = vsub.s32 %v1708, %v1710
    %v1712 = vrot.slane %v1684, %v1711
    %v1713 = vcombine.high %v1691, %v1691
    %v1714 = vcombine.high %v1698, %v1698
    %v1715 = vcombine.high %v1705, %v1705
    %v1716 = vcombine.high %v1712, %v1712
    %v1717 = vcombine.high %v1663, %v1663
    %v1719 = vunpack.c.l.s4 1966171168
    %v1720 = vunpack.c.0.s8 %v1719
    %v1721 = vlaneseq
    %v1722 = vshrl.u32 %v1721, 7
    %v1723 = vsub.s32 %v1720, %v1722
    %v1724 = vrot.slane %v1663, %v1723
    %v1726 = vunpack.c.l.s4 1966171168
    %v1727 = vunpack.c.0.s8 %v1726
    %v1728 = vlaneseq
    %v1729 = vshrl.u32 %v1728, 7
    %v1730 = vsub.s32 %v1727, %v1729
    %v1731 = vrot.slane %v1717, %v1730
    %v1732 = vcombine.high %v1724, %v1724
    %v1733 = vcombine.high %v1731, %v1731
    %v1735 = vunpack.c.l.s4 1966171168
    %v1736 = vunpack.c.0.s8 %v1735
    %v1737 = vlaneseq
    %v1738 = vshrl.u32 %v1737, 7
    %v1739 = vsub.s32 %v1736, %v1738
    %v1740 = vrot.slane %v1724, %v1739
    %v1742 = vunpack.c.l.s4 1966171168
    %v1743 = vunpack.c.0.s8 %v1742
    %v1744 = vlaneseq
    %v1745 = vshrl.u32 %v1744, 7
    %v1746 = vsub.s32 %v1743, %v1745
    %v1747 = vrot.slane %v1731, %v1746
    %v1749 = vunpack.c.l.s4 1966171168
    %v1750 = vunpack.c.0.s8 %v1749
    %v1751 = vlaneseq
    %v1752 = vshrl.u32 %v1751, 7
    %v1753 = vsub.s32 %v1750, %v1752
    %v1754 = vrot.slane %v1732, %v1753
    %v1756 = vunpack.c.l.s4 1966171168
    %v1757 = vunpack.c.0.s8 %v1756
    %v1758 = vlaneseq
    %v1759 = vshrl.u32 %v1758, 7
    %v1760 = vsub.s32 %v1757, %v1759
    %v1761 = vrot.slane %v1733, %v1760
    %v1762 = vcombine.high %v1740, %v1740
    %v1763 = vcombine.high %v1747, %v1747
    %v1764 = vcombine.high %v1754, %v1754
    %v1765 = vcombine.high %v1761, %v1761
    %v1766 = vlaneseq
    %v1767 = vshrl.u32 %v1766, 7
    %v1768 = vsub.s32 0, %v1767
    %v1769 = vrot.slane %v1691, %v1768
    %v1770 = vlaneseq
    %v1771 = vshrl.u32 %v1770, 7
    %v1772 = vsub.s32 0, %v1771
    %v1773 = vrot.slane %v1705, %v1772
    %v1774 = vlaneseq
    %v1775 = vshrl.u32 %v1774, 7
    %v1776 = vsub.s32 0, %v1775
    %v1777 = vrot.slane %v1713, %v1776
    %v1778 = vlaneseq
    %v1779 = vshrl.u32 %v1778, 7
    %v1780 = vsub.s32 0, %v1779
    %v1781 = vrot.slane %v1715, %v1780
    %v1782 = vlaneseq
    %v1783 = vshrl.u32 %v1782, 7
    %v1784 = vsub.s32 0, %v1783
    %v1785 = vrot.slane %v1698, %v1784
    %v1786 = vlaneseq
    %v1787 = vshrl.u32 %v1786, 7
    %v1788 = vsub.s32 0, %v1787
    %v1789 = vrot.slane %v1712, %v1788
    %v1790 = vlaneseq
    %v1791 = vshrl.u32 %v1790, 7
    %v1792 = vsub.s32 0, %v1791
    %v1793 = vrot.slane %v1714, %v1792
    %v1794 = vlaneseq
    %v1795 = vshrl.u32 %v1794, 7
    %v1796 = vsub.s32 0, %v1795
    %v1797 = vrot.slane %v1716, %v1796
    %v1798 = vlaneseq
    %v1799 = vshrl.u32 %v1798, 7
    %v1800 = vsub.s32 0, %v1799
    %v1801 = vrot.slane %v1740, %v1800
    %v1802 = vlaneseq
    %v1803 = vshrl.u32 %v1802, 7
    %v1804 = vsub.s32 0, %v1803
    %v1805 = vrot.slane %v1754, %v1804
    %v1806 = vlaneseq
    %v1807 = vshrl.u32 %v1806, 7
    %v1808 = vsub.s32 0, %v1807
    %v1809 = vrot.slane %v1762, %v1808
    %v1810 = vlaneseq
    %v1811 = vshrl.u32 %v1810, 7
    %v1812 = vsub.s32 0, %v1811
    %v1813 = vrot.slane %v1764, %v1812
    %v1814 = vlaneseq
    %v1815 = vshrl.u32 %v1814, 7
    %v1816 = vsub.s32 0, %v1815
    %v1817 = vrot.slane %v1747, %v1816
    %v1818 = vlaneseq
    %v1819 = vshrl.u32 %v1818, 7
    %v1820 = vsub.s32 0, %v1819
    %v1821 = vrot.slane %v1761, %v1820
    %v1822 = vlaneseq
    %v1823 = vshrl.u32 %v1822, 7
    %v1824 = vsub.s32 0, %v1823
    %v1825 = vrot.slane %v1763, %v1824
    %v1826 = vlaneseq
    %v1827 = vshrl.u32 %v1826, 7
    %v1828 = vsub.s32 0, %v1827
    %v1829 = vrot.slane %v1765, %v1828
    %1830 = vrot.lane.b32.xlu0 %v1769, 32
    %v1831 = vpop.permute.xlu0 %1830
    %1832 = vrot.lane.b32.xlu0 %v1773, 32
    %v1833 = vpop.permute.xlu0 %1832
    %1834 = vrot.lane.b32.xlu0 %v1777, 32
    %v1835 = vpop.permute.xlu0 %1834
    %1836 = vrot.lane.b32.xlu0 %v1781, 32
    %v1837 = vpop.permute.xlu0 %1836
    %1838 = vrot.lane.b32.xlu0 %v1785, 32
    %v1839 = vpop.permute.xlu0 %1838
    %1840 = vrot.lane.b32.xlu0 %v1789, 32
    %v1841 = vpop.permute.xlu0 %1840
    %1842 = vrot.lane.b32.xlu0 %v1793, 32
    %v1843 = vpop.permute.xlu0 %1842
    %1844 = vrot.lane.b32.xlu0 %v1797, 32
    %v1845 = vpop.permute.xlu0 %1844
    %1846 = vrot.lane.b32.xlu0 %v1801, 32
    %v1847 = vpop.permute.xlu0 %1846
    %1848 = vrot.lane.b32.xlu0 %v1805, 32
    %v1849 = vpop.permute.xlu0 %1848
    %1850 = vrot.lane.b32.xlu0 %v1809, 32
    %v1851 = vpop.permute.xlu0 %1850
    %1852 = vrot.lane.b32.xlu0 %v1813, 32
    %v1853 = vpop.permute.xlu0 %1852
    %1854 = vrot.lane.b32.xlu0 %v1817, 32
    %v1855 = vpop.permute.xlu0 %1854
    %1856 = vrot.lane.b32.xlu0 %v1821, 32
    %v1857 = vpop.permute.xlu0 %1856
    %1858 = vrot.lane.b32.xlu0 %v1825, 32
    %v1859 = vpop.permute.xlu0 %1858
    %1860 = vrot.lane.b32.xlu0 %v1829, 32
    %v1861 = vpop.permute.xlu0 %1860
    %v1878 = vadd.f32 %v409, %v1831
    %v1879 = vadd.f32 %v412, %v1833
    %v1880 = vadd.f32 %v417, %v1835
    %v1881 = vadd.f32 %v420, %v1837
    %v1882 = vadd.f32 %v425, %v1839
    %v1883 = vadd.f32 %v428, %v1841
    %v1884 = vadd.f32 %v433, %v1843
    %v1885 = vadd.f32 %v436, %v1845
    %v1886 = vadd.f32 %v441, %v1847
    %v1887 = vadd.f32 %v444, %v1849
    %v1888 = vadd.f32 %v449, %v1851
    %v1889 = vadd.f32 %v452, %v1853
    %v1890 = vadd.f32 %v457, %v1855
    %v1891 = vadd.f32 %v460, %v1857
    %v1892 = vadd.f32 %v465, %v1859
    %v1893 = vadd.f32 %v468, %v1861
    %v1894 = vtanh.pop %v1878
    %v1895 = vtanh.pop %v1879
    %v1896 = vtanh.pop %v1880
    %v1897 = vtanh.pop %v1881
    %v1898 = vtanh.pop %v1882
    %v1899 = vtanh.pop %v1883
    %v1900 = vtanh.pop %v1884
    %v1901 = vtanh.pop %v1885
    %v1902 = vtanh.pop %v1886
    %v1903 = vtanh.pop %v1887
    %v1904 = vtanh.pop %v1888
    %v1905 = vtanh.pop %v1889
    %v1906 = vtanh.pop %v1890
    %v1907 = vtanh.pop %v1891
    %v1908 = vtanh.pop %v1892
    %v1909 = vtanh.pop %v1893
    %v1910 = vld [vmem:[%s8] sm:$0x1]
    %v1912 = vlaneseq
    %v1913 = vshrl.u32 %v1912, 7
    %v1914 = vsub.s32 0, %v1913
    %v1915 = vrot.slane %v1910, %v1914
    %1916 = vrot.lane.b32.xlu0 %v1915, 32
    %v1917 = vpop.permute.xlu0 %1916
    %v1919 = vmul.f32 %v1894, %v1917
    %v1920 = vmul.f32 %v1895, %v1917
    %v1921 = vmul.f32 %v1896, %v1917
    %v1922 = vmul.f32 %v1897, %v1917
    %v1923 = vmul.f32 %v1898, %v1917
    %v1924 = vmul.f32 %v1899, %v1917
    %v1925 = vmul.f32 %v1900, %v1917
    %v1926 = vmul.f32 %v1901, %v1917
    %v1927 = vmul.f32 %v1902, %v1917
    %v1928 = vmul.f32 %v1903, %v1917
    %v1929 = vmul.f32 %v1904, %v1917
    %v1930 = vmul.f32 %v1905, %v1917
    %v1931 = vmul.f32 %v1906, %v1917
    %v1932 = vmul.f32 %v1907, %v1917
    %v1933 = vmul.f32 %v1908, %v1917
    %v1934 = vmul.f32 %v1909, %v1917
    %1951 = vrot.lane.b32.xlu0 %v1919, 96
    %v1952 = vpop.permute.xlu0 %1951
    %1953 = vrot.lane.b32.xlu0 %v1920, 96
    %v1954 = vpop.permute.xlu0 %1953
    %1955 = vrot.lane.b32.xlu0 %v1921, 96
    %v1956 = vpop.permute.xlu0 %1955
    %1957 = vrot.lane.b32.xlu0 %v1922, 96
    %v1958 = vpop.permute.xlu0 %1957
    %1959 = vrot.lane.b32.xlu0 %v1923, 96
    %v1960 = vpop.permute.xlu0 %1959
    %1961 = vrot.lane.b32.xlu0 %v1924, 96
    %v1962 = vpop.permute.xlu0 %1961
    %1963 = vrot.lane.b32.xlu0 %v1925, 96
    %v1964 = vpop.permute.xlu0 %1963
    %1965 = vrot.lane.b32.xlu0 %v1926, 96
    %v1966 = vpop.permute.xlu0 %1965
    %1967 = vrot.lane.b32.xlu0 %v1927, 96
    %v1968 = vpop.permute.xlu0 %1967
    %1969 = vrot.lane.b32.xlu0 %v1928, 96
    %v1970 = vpop.permute.xlu0 %1969
    %1971 = vrot.lane.b32.xlu0 %v1929, 96
    %v1972 = vpop.permute.xlu0 %1971
    %1973 = vrot.lane.b32.xlu0 %v1930, 96
    %v1974 = vpop.permute.xlu0 %1973
    %1975 = vrot.lane.b32.xlu0 %v1931, 96
    %v1976 = vpop.permute.xlu0 %1975
    %1977 = vrot.lane.b32.xlu0 %v1932, 96
    %v1978 = vpop.permute.xlu0 %1977
    %1979 = vrot.lane.b32.xlu0 %v1933, 96
    %v1980 = vpop.permute.xlu0 %1979
    %1981 = vrot.lane.b32.xlu0 %v1934, 96
    %v1982 = vpop.permute.xlu0 %1981
    %v1999 = vsel %vm275, %v1952, 0.0
    %2000 = vadd.xlane.f32.xlu0 %v1999
    %v2001 = vpop.xlane.xlu0 %2000
    %v2002 = vsel %vm275, %v1954, 0.0
    %2003 = vadd.xlane.f32.xlu0 %v2002
    %v2004 = vpop.xlane.xlu0 %2003
    %v2005 = vsel %vm275, %v1956, 0.0
    %2006 = vadd.xlane.f32.xlu0 %v2005
    %v2007 = vpop.xlane.xlu0 %2006
    %v2008 = vsel %vm275, %v1958, 0.0
    %2009 = vadd.xlane.f32.xlu0 %v2008
    %v2010 = vpop.xlane.xlu0 %2009
    %v2011 = vsel %vm275, %v1960, 0.0
    %2012 = vadd.xlane.f32.xlu0 %v2011
    %v2013 = vpop.xlane.xlu0 %2012
    %v2014 = vsel %vm275, %v1962, 0.0
    %2015 = vadd.xlane.f32.xlu0 %v2014
    %v2016 = vpop.xlane.xlu0 %2015
    %v2017 = vsel %vm275, %v1964, 0.0
    %2018 = vadd.xlane.f32.xlu0 %v2017
    %v2019 = vpop.xlane.xlu0 %2018
    %v2020 = vsel %vm275, %v1966, 0.0
    %2021 = vadd.xlane.f32.xlu0 %v2020
    %v2022 = vpop.xlane.xlu0 %2021
    %v2023 = vsel %vm275, %v1968, 0.0
    %2024 = vadd.xlane.f32.xlu0 %v2023
    %v2025 = vpop.xlane.xlu0 %2024
    %v2026 = vsel %vm275, %v1970, 0.0
    %2027 = vadd.xlane.f32.xlu0 %v2026
    %v2028 = vpop.xlane.xlu0 %2027
    %v2029 = vsel %vm275, %v1972, 0.0
    %2030 = vadd.xlane.f32.xlu0 %v2029
    %v2031 = vpop.xlane.xlu0 %2030
    %v2032 = vsel %vm275, %v1974, 0.0
    %2033 = vadd.xlane.f32.xlu0 %v2032
    %v2034 = vpop.xlane.xlu0 %2033
    %v2035 = vsel %vm275, %v1976, 0.0
    %2036 = vadd.xlane.f32.xlu0 %v2035
    %v2037 = vpop.xlane.xlu0 %2036
    %v2038 = vsel %vm275, %v1978, 0.0
    %2039 = vadd.xlane.f32.xlu0 %v2038
    %v2040 = vpop.xlane.xlu0 %2039
    %v2041 = vsel %vm275, %v1980, 0.0
    %2042 = vadd.xlane.f32.xlu0 %v2041
    %v2043 = vpop.xlane.xlu0 %2042
    %v2044 = vsel %vm275, %v1982, 0.0
    %2045 = vadd.xlane.f32.xlu0 %v2044
    %v2046 = vpop.xlane.xlu0 %2045
    %v2063 = vlaneseq
    %v2064 = vshrl.u32 %v2063, 7
    %v2065 = vsub.s32 %v854, %v2064
    %v2066 = vrot.slane %v2001, %v2065
    %v2067 = vlaneseq
    %v2068 = vshrl.u32 %v2067, 7
    %v2069 = vsub.s32 %v854, %v2068
    %v2070 = vrot.slane %v2004, %v2069
    %v2071 = vlaneseq
    %v2072 = vshrl.u32 %v2071, 7
    %v2073 = vsub.s32 %v854, %v2072
    %v2074 = vrot.slane %v2007, %v2073
    %v2075 = vlaneseq
    %v2076 = vshrl.u32 %v2075, 7
    %v2077 = vsub.s32 %v854, %v2076
    %v2078 = vrot.slane %v2010, %v2077
    %v2079 = vlaneseq
    %v2080 = vshrl.u32 %v2079, 7
    %v2081 = vsub.s32 %v854, %v2080
    %v2082 = vrot.slane %v2013, %v2081
    %v2083 = vlaneseq
    %v2084 = vshrl.u32 %v2083, 7
    %v2085 = vsub.s32 %v854, %v2084
    %v2086 = vrot.slane %v2016, %v2085
    %v2087 = vlaneseq
    %v2088 = vshrl.u32 %v2087, 7
    %v2089 = vsub.s32 %v854, %v2088
    %v2090 = vrot.slane %v2019, %v2089
    %v2091 = vlaneseq
    %v2092 = vshrl.u32 %v2091, 7
    %v2093 = vsub.s32 %v854, %v2092
    %v2094 = vrot.slane %v2022, %v2093
    %v2095 = vlaneseq
    %v2096 = vshrl.u32 %v2095, 7
    %v2097 = vsub.s32 %v854, %v2096
    %v2098 = vrot.slane %v2025, %v2097
    %v2099 = vlaneseq
    %v2100 = vshrl.u32 %v2099, 7
    %v2101 = vsub.s32 %v854, %v2100
    %v2102 = vrot.slane %v2028, %v2101
    %v2103 = vlaneseq
    %v2104 = vshrl.u32 %v2103, 7
    %v2105 = vsub.s32 %v854, %v2104
    %v2106 = vrot.slane %v2031, %v2105
    %v2107 = vlaneseq
    %v2108 = vshrl.u32 %v2107, 7
    %v2109 = vsub.s32 %v854, %v2108
    %v2110 = vrot.slane %v2034, %v2109
    %v2111 = vlaneseq
    %v2112 = vshrl.u32 %v2111, 7
    %v2113 = vsub.s32 %v854, %v2112
    %v2114 = vrot.slane %v2037, %v2113
    %v2115 = vlaneseq
    %v2116 = vshrl.u32 %v2115, 7
    %v2117 = vsub.s32 %v854, %v2116
    %v2118 = vrot.slane %v2040, %v2117
    %v2119 = vlaneseq
    %v2120 = vshrl.u32 %v2119, 7
    %v2121 = vsub.s32 %v854, %v2120
    %v2122 = vrot.slane %v2043, %v2121
    %v2123 = vlaneseq
    %v2124 = vshrl.u32 %v2123, 7
    %v2125 = vsub.s32 %v854, %v2124
    %v2126 = vrot.slane %v2046, %v2125
    %v2127 = vsel %vm919, %v2070, %v2066
    %v2128 = vsel %vm921, %v2074, %v2127
    %v2129 = vsel %vm923, %v2078, %v2128
    %v2130 = vsel %vm925, %v2082, %v2129
    %v2131 = vsel %vm927, %v2086, %v2130
    %v2132 = vsel %vm929, %v2090, %v2131
    %v2133 = vsel %vm931, %v2094, %v2132
    %v2134 = vsel %vm919, %v2102, %v2098
    %v2135 = vsel %vm921, %v2106, %v2134
    %v2136 = vsel %vm923, %v2110, %v2135
    %v2137 = vsel %vm925, %v2114, %v2136
    %v2138 = vsel %vm927, %v2118, %v2137
    %v2139 = vsel %vm929, %v2122, %v2138
    %v2140 = vsel %vm931, %v2126, %v2139
    %2143 = vst.msk [vmem:[%s9] sm:$0xff] %vm942, %v2133
    %2144 = vst.msk [vmem:[%s9 + $0x8] sm:$0xff] %vm942, %v2140
    // Predicated region
    $region62: #{tpu_custom_call.1} parent=1 // pred_check
      _
    $region63: #{tpu_custom_call.1} parent=1 // pred_check_branch
      %2146 = sbr.rel (0) target = $region65
    $region64: #{tpu_custom_call.1} parent=1 // pred_region
      _
    $region65: #{tpu_custom_call.1} parent=1 // pred_fallthru
      _
    // Predicated region
    $region66: #{tpu_custom_call.1} parent=1 // pred_check
      _
    $region67: #{tpu_custom_call.1} parent=1 // pred_check_branch
      %2148 = sbr.rel (0) target = $region69
    $region68: #{tpu_custom_call.1} parent=1 // pred_region
      %s2150 = ssub.s32 256, 256
      %2151 = vsyncadd [#allocation4], %s2150
      %s2152 = sshll.u32 [#allocation13], 4
      %s2153 = int_to_ptr.vmem [resolvable:$true] %s2152
      %2158 = dma.vmem_to_hbm [thread:$0]  %s2153, 256, %s10, [#allocation4], 128, 128, 8
    $region69: #{tpu_custom_call.1} parent=1 // pred_fallthru
      _
    // Predicated region
    $region70: #{tpu_custom_call.1} parent=1 // pred_check
      _
    $region71: #{tpu_custom_call.1} parent=1 // pred_check_branch
      %2160 = sbr.rel (0) target = $region73
    $region72: #{tpu_custom_call.1} parent=1 // pred_region
      _
    $region73: #{tpu_custom_call.1} parent=1 // pred_fallthru
      _
    // Predicated region
    $region74: #{tpu_custom_call.1} parent=1 // pred_check
      _
    $region75: #{tpu_custom_call.1} parent=1 // pred_check_branch
      %2162 = sbr.rel (0) target = $region77
    $region76: #{tpu_custom_call.1} parent=1 // pred_region
      %2163 = dma.done [#allocation4], 256
    $region77: #{tpu_custom_call.1} parent=1 // pred_fallthru
      _
    %2164 = vsyncpa [#allocation3], 1
    %2165 = vsyncpa [#allocation6], 1
    %2166 = vsyncpa [#allocation9], 1
    %2167 = vsyncpa [#allocation12], 1
    %2168 = vsyncpa [#allocation4], 1

</llo_original>
